<compile_context>
chip_gen: v6e
topology: v6e:2x2x1
jax: 0.10.0
libtpu: 0.0.40
codegen_flags: <defaults>
</compile_context>

<pallas_src>
import functools

import jax
import jax.numpy as jnp
from jax import lax
from jax.experimental import pallas as pl
from jax.experimental.pallas import tpu as pltpu

# Large finite negative for the causal mask (safer than -inf).
_MASK_VALUE = float(jnp.finfo(jnp.float32).min) / 2.0


def _mha_kernel(x_ref, wk_ref, wq_ref, wv_ref, wp_ref, bp_ref, o_ref, *,
                scale, num_heads, is_decoder):
    # x_ref: (bb, T, C) bf16 batch-block.  Weights are head-major bf16:
    #   wk/wq/wv_ref: (NH, C, H), wp_ref: (NH, H, C), bp_ref: (1, C) f32.
    bb, T, C = x_ref.shape
    H = C // num_heads
    x2 = x_ref[...].reshape(bb * T, C)                     # (M, C) bf16

    if is_decoder:
        row = lax.broadcasted_iota(jnp.int32, (T, T), 0)
        col = lax.broadcasted_iota(jnp.int32, (T, T), 1)
        causal = (col <= row)[None, :, :]                  # (1, T, T)

    # Per-head attention accumulated straight into the output projection:
    #   concat(heads) @ Wproj == sum_h head_h @ Wproj[h*H:(h+1)*H, :]
    acc = jnp.zeros((bb * T, C), dtype=jnp.float32)
    for h in range(num_heads):
        # Head-major weight indexing: leading-dim index, no lane slicing.
        kh = jnp.dot(x2, wk_ref[h], preferred_element_type=jnp.float32)   # (M, H)
        # Fold 1/sqrt(C) into q (scales M*H elems instead of T*T scores).
        qh = jnp.dot(x2, wq_ref[h], preferred_element_type=jnp.float32) * scale
        vh = jnp.dot(x2, wv_ref[h], preferred_element_type=jnp.float32)

        kh = kh.reshape(bb, T, H).astype(jnp.bfloat16)
        qh = qh.reshape(bb, T, H).astype(jnp.bfloat16)
        vh = vh.reshape(bb, T, H).astype(jnp.bfloat16)

        # Scores: batched dot over the batch-block, contract head dim.
        s = jnp.einsum('bqh,bkh->bqk', qh, kh,
                       preferred_element_type=jnp.float32)                # (bb, T, T)
        if is_decoder:
            s = jnp.where(causal, s, _MASK_VALUE)

        # Numerically stable softmax; division via EUP approx reciprocal.
        m = jnp.max(s, axis=-1, keepdims=True)
        e = jnp.exp(s - m)
        p = e * pl.reciprocal(jnp.sum(e, axis=-1, keepdims=True), approx=True)

        oh = jnp.einsum('bqk,bkh->bqh', p.astype(jnp.bfloat16), vh,
                        preferred_element_type=jnp.float32)               # (bb, T, H)

        acc = acc + jnp.dot(oh.reshape(bb * T, H).astype(jnp.bfloat16),
                            wp_ref[h], preferred_element_type=jnp.float32)  # (M, C)

    out = acc + bp_ref[...]                                               # (M, C)
    o_ref[...] = out.reshape(bb, T, C).astype(o_ref.dtype)


def mha_forward(x, wk, wq, wv, wproj, bproj, *, num_heads, is_decoder=False,
                num_batch_blocks=None):
    """Fused multi-head attention (+ output projection), eval mode.

    x:        (B, T, C)
    wk/wq/wv: (C, C)  stacked per-head projection weights (head h -> columns
                      [h*H, (h+1)*H), H = C // num_heads); layout is x @ W.
    wproj:    (C, C)  output projection weight (x @ W layout)
    bproj:    (1, C)  output projection bias
    returns   (B, T, C) in x.dtype
    """
    B, T, C = x.shape
    assert C % num_heads == 0
    H = C // num_heads
    scale = float(C) ** -0.5       # PyTorch Head scales by n_embed ** -0.5
    out_dtype = x.dtype

    if num_batch_blocks is None:
        # 2-way parallel split by default (v7x dual TensorCore); callers on
        # single-TC chips (v5e/v6e) can pass num_batch_blocks=1.
        num_batch_blocks = 2 if (B >= 2 and B % 2 == 0) else 1
    assert B % num_batch_blocks == 0
    bb = B // num_batch_blocks

    # One-time relayout + bf16 cast in the wrapper (NOT per grid step).
    wk_hm = wk.reshape(C, num_heads, H).transpose(1, 0, 2).astype(jnp.bfloat16)
    wq_hm = wq.reshape(C, num_heads, H).transpose(1, 0, 2).astype(jnp.bfloat16)
    wv_hm = wv.reshape(C, num_heads, H).transpose(1, 0, 2).astype(jnp.bfloat16)
    wp_hm = wproj.reshape(num_heads, H, C).astype(jnp.bfloat16)
    x_bf = x.astype(jnp.bfloat16)
    bp = bproj.reshape(1, C).astype(jnp.float32)

    kernel = functools.partial(_mha_kernel, scale=scale,
                               num_heads=num_heads, is_decoder=is_decoder)

    return pl.pallas_call(
        kernel,
        out_shape=jax.ShapeDtypeStruct((B, T, C), out_dtype),
        grid_spec=pltpu.PrefetchScalarGridSpec(
            num_scalar_prefetch=0,
            grid=(num_batch_blocks,),
            in_specs=[
                pl.BlockSpec((bb, T, C), lambda b: (b, 0, 0)),
                pl.BlockSpec((num_heads, C, H), lambda b: (0, 0, 0)),
                pl.BlockSpec((num_heads, C, H), lambda b: (0, 0, 0)),
                pl.BlockSpec((num_heads, C, H), lambda b: (0, 0, 0)),
                pl.BlockSpec((num_heads, H, C), lambda b: (0, 0, 0)),
                pl.BlockSpec((1, C), lambda b: (0, 0)),
            ],
            out_specs=pl.BlockSpec((bb, T, C), lambda b: (b, 0, 0)),
        ),
        compiler_params=pltpu.CompilerParams(
            dimension_semantics=("parallel",),
        ),
    )(x_bf, wk_hm, wq_hm, wv_hm, wp_hm, bp)


def mha_reference(x, wk, wq, wv, wproj, bproj, *, num_heads, is_decoder=False):
    """Plain-JAX f32 reference reproducing the PyTorch MultiHeadAttention
    forward (eval mode) with per-head weights stacked the same way."""
    B, T, C = x.shape
    H = C // num_heads
    k = x @ wk
    q = x @ wq
    v = x @ wv
    kh = k.reshape(B, T, num_heads, H)
    qh = q.reshape(B, T, num_heads, H)
    vh = v.reshape(B, T, num_heads, H)
    wei = jnp.einsum("bqnh,bknh->bnqk", qh, kh) * (C ** -0.5)
    if is_decoder:
        mask = jnp.tril(jnp.ones((T, T), dtype=bool))
        wei = jnp.where(mask, wei, -jnp.inf)
    wei = jax.nn.softmax(wei, axis=-1)
    out = jnp.einsum("bnqk,bknh->bqnh", wei, vh).reshape(B, T, C)
    return out @ wproj + bproj


if __name__ == "__main__":
    # Small but lane-dense shapes: n_embed = 128 (one full lane group),
    # 4 heads of size 32, matching the MultiHeadAttention structure.
    B, T, C, NH = 2, 16, 128, 4

    key = jax.random.PRNGKey(0)
    kx, kk, kq, kv, kp, kb = jax.random.split(key, 6)

    x = jax.random.normal(kx, (B, T, C), dtype=jnp.float32)
    # deterministic init mimicking nn.Linear's U(-1/sqrt(C), 1/sqrt(C))
    bound = 1.0 / (C ** 0.5)
    wk = jax.random.uniform(kk, (C, C), jnp.float32, -bound, bound)
    wq = jax.random.uniform(kq, (C, C), jnp.float32, -bound, bound)
    wv = jax.random.uniform(kv, (C, C), jnp.float32, -bound, bound)
    wproj = jax.random.uniform(kp, (C, C), jnp.float32, -bound, bound)
    bproj = jax.random.uniform(kb, (1, C), jnp.float32, -bound, bound)

    for is_decoder in (False, True):
        ref = mha_reference(x, wk, wq, wv, wproj, bproj,
                            num_heads=NH, is_decoder=is_decoder)
        for nblocks in (1, 2):  # 1: batch-flattened (v5e/v6e); 2: dual-TC (v7x)
            out = mha_forward(x, wk, wq, wv, wproj, bproj,
                              num_heads=NH, is_decoder=is_decoder,
                              num_batch_blocks=nblocks)
            out = jax.block_until_ready(out)
            assert out.shape == (B, T, C)
            err = float(jnp.max(jnp.abs(out - ref)))
            # bf16 MXU inputs + approx reciprocal -> loose tolerance.
            assert err < 5e-2, (
                f"mismatch (is_decoder={is_decoder}, blocks={nblocks}): "
                f"max |err|={err}")

    print("KERNEL_OK")
</pallas_src>

<mosaic_0001>
module attributes {stable_mosaic.version = 11 : i64} {
  func.func @_mha_kernel(%arg0: i32, %arg1: memref<2x16x128xbf16, #tpu.memory_space<vmem>>, %arg2: memref<4x128x32xbf16, #tpu.memory_space<vmem>>, %arg3: memref<4x128x32xbf16, #tpu.memory_space<vmem>>, %arg4: memref<4x128x32xbf16, #tpu.memory_space<vmem>>, %arg5: memref<4x32x128xbf16, #tpu.memory_space<vmem>>, %arg6: memref<1x128xf32, #tpu.memory_space<vmem>>, %arg7: memref<2x16x128xf32, #tpu.memory_space<vmem>>) attributes {dimension_semantics = [#tpu.dimension_semantics<parallel>], iteration_bounds = array<i64: 1>, scalar_prefetch = 0 : i64, scratch_operands = 0 : i64, tpu.core_type = #tpu.core_type<tc>, window_params = [{transform_indices = @transform_0, window_bounds = array<i64: 2, 16, 128>}, {pipeline_mode = #tpu.pipeline_mode<synchronous>, transform_indices = @transform_1, window_bounds = array<i64: 4, 128, 32>}, {pipeline_mode = #tpu.pipeline_mode<synchronous>, transform_indices = @transform_2, window_bounds = array<i64: 4, 128, 32>}, {pipeline_mode = #tpu.pipeline_mode<synchronous>, transform_indices = @transform_3, window_bounds = array<i64: 4, 128, 32>}, {pipeline_mode = #tpu.pipeline_mode<synchronous>, transform_indices = @transform_4, window_bounds = array<i64: 4, 32, 128>}, {pipeline_mode = #tpu.pipeline_mode<synchronous>, transform_indices = @transform_5, window_bounds = array<i64: 1, 128>}, {transform_indices = @transform_6, window_bounds = array<i64: 2, 16, 128>}]} {
    %c0 = arith.constant 0 : index
    %c0_0 = arith.constant 0 : index
    %c0_1 = arith.constant 0 : index
    %0 = vector.load %arg1[%c0, %c0_0, %c0_1] : memref<2x16x128xbf16, #tpu.memory_space<vmem>>, vector<2x16x128xbf16>
    %1 = vector.shape_cast %0 : vector<2x16x128xbf16> to vector<32x128xbf16>
    %cst = arith.constant 0.000000e+00 : f32
    %2 = vector.broadcast %cst : f32 to vector<32x128xf32>
    %c0_2 = arith.constant 0 : index
    %c0_3 = arith.constant 0 : index
    %c0_4 = arith.constant 0 : index
    %3 = vector.load %arg2[%c0_2, %c0_3, %c0_4] : memref<4x128x32xbf16, #tpu.memory_space<vmem>>, vector<1x128x32xbf16>
    %4 = vector.shape_cast %3 : vector<1x128x32xbf16> to vector<128x32xbf16>
    %cst_5 = arith.constant dense<0.000000e+00> : vector<32x32xf32>
    %5 = tpu.matmul %1, %4, %cst_5 {dimension_numbers = #tpu.dot_dimension_numbers<[1], [0], [0], [1], [0, 0, 1, 1], [], []>} : vector<32x128xbf16>, vector<128x32xbf16>, vector<32x32xf32> -> vector<32x32xf32>
    %c0_6 = arith.constant 0 : index
    %c0_7 = arith.constant 0 : index
    %c0_8 = arith.constant 0 : index
    %6 = vector.load %arg3[%c0_6, %c0_7, %c0_8] : memref<4x128x32xbf16, #tpu.memory_space<vmem>>, vector<1x128x32xbf16>
    %7 = vector.shape_cast %6 : vector<1x128x32xbf16> to vector<128x32xbf16>
    %cst_9 = arith.constant dense<0.000000e+00> : vector<32x32xf32>
    %8 = tpu.matmul %1, %7, %cst_9 {dimension_numbers = #tpu.dot_dimension_numbers<[1], [0], [0], [1], [0, 0, 1, 1], [], []>} : vector<32x128xbf16>, vector<128x32xbf16>, vector<32x32xf32> -> vector<32x32xf32>
    %cst_10 = arith.constant 0.0883883461 : f32
    %9 = vector.broadcast %cst_10 : f32 to vector<32x32xf32>
    %10 = arith.mulf %8, %9 : vector<32x32xf32>
    %c0_11 = arith.constant 0 : index
    %c0_12 = arith.constant 0 : index
    %c0_13 = arith.constant 0 : index
    %11 = vector.load %arg4[%c0_11, %c0_12, %c0_13] : memref<4x128x32xbf16, #tpu.memory_space<vmem>>, vector<1x128x32xbf16>
    %12 = vector.shape_cast %11 : vector<1x128x32xbf16> to vector<128x32xbf16>
    %cst_14 = arith.constant dense<0.000000e+00> : vector<32x32xf32>
    %13 = tpu.matmul %1, %12, %cst_14 {dimension_numbers = #tpu.dot_dimension_numbers<[1], [0], [0], [1], [0, 0, 1, 1], [], []>} : vector<32x128xbf16>, vector<128x32xbf16>, vector<32x32xf32> -> vector<32x32xf32>
    %14 = vector.shape_cast %5 : vector<32x32xf32> to vector<2x16x32xf32>
    %15 = arith.truncf %14 : vector<2x16x32xf32> to vector<2x16x32xbf16>
    %16 = vector.shape_cast %10 : vector<32x32xf32> to vector<2x16x32xf32>
    %17 = arith.truncf %16 : vector<2x16x32xf32> to vector<2x16x32xbf16>
    %18 = vector.shape_cast %13 : vector<32x32xf32> to vector<2x16x32xf32>
    %19 = arith.truncf %18 : vector<2x16x32xf32> to vector<2x16x32xbf16>
    "tpu.trace_start"() <{level = 10 : i32, message = "bqh,bkh->bqk"}> : () -> ()
    %cst_15 = arith.constant dense<0.000000e+00> : vector<2x16x16xf32>
    %20 = tpu.matmul %17, %15, %cst_15 {dimension_numbers = #tpu.dot_dimension_numbers<[2], [2], [1], [1], [0, 0, 0, 1, 1, 1], [0], [0]>} : vector<2x16x32xbf16>, vector<2x16x32xbf16>, vector<2x16x16xf32> -> vector<2x16x16xf32>
    "tpu.trace_stop"() : () -> ()
    %cst_16 = arith.constant dense<0xFF800000> : vector<2x16xf32>
    %21 = vector.multi_reduction <maximumf>, %20, %cst_16 [2] : vector<2x16x16xf32> to vector<2x16xf32>
    %22 = vector.shape_cast %21 : vector<2x16xf32> to vector<2x16x1xf32>
    %23 = vector.broadcast %22 : vector<2x16x1xf32> to vector<2x16x16xf32>
    %24 = arith.subf %20, %23 : vector<2x16x16xf32>
    %25 = math.exp %24 : vector<2x16x16xf32>
    %cst_17 = arith.constant dense<0.000000e+00> : vector<2x16xf32>
    %26 = vector.multi_reduction <add>, %25, %cst_17 [2] : vector<2x16x16xf32> to vector<2x16xf32>
    %27 = vector.shape_cast %26 : vector<2x16xf32> to vector<2x16x1xf32>
    %28 = tpu.reciprocal %27 {approx = true} : vector<2x16x1xf32> -> vector<2x16x1xf32>
    %29 = vector.broadcast %28 : vector<2x16x1xf32> to vector<2x16x16xf32>
    %30 = arith.mulf %25, %29 : vector<2x16x16xf32>
    %31 = arith.truncf %30 : vector<2x16x16xf32> to vector<2x16x16xbf16>
    "tpu.trace_start"() <{level = 10 : i32, message = "bqk,bkh->bqh"}> : () -> ()
    %cst_18 = arith.constant dense<0.000000e+00> : vector<2x16x32xf32>
    %32 = tpu.matmul %31, %19, %cst_18 {dimension_numbers = #tpu.dot_dimension_numbers<[2], [1], [1], [2], [0, 0, 0, 1, 1, 2], [0], [0]>} : vector<2x16x16xbf16>, vector<2x16x32xbf16>, vector<2x16x32xf32> -> vector<2x16x32xf32>
    "tpu.trace_stop"() : () -> ()
    %33 = vector.shape_cast %32 : vector<2x16x32xf32> to vector<32x32xf32>
    %34 = arith.truncf %33 : vector<32x32xf32> to vector<32x32xbf16>
    %c0_19 = arith.constant 0 : index
    %c0_20 = arith.constant 0 : index
    %c0_21 = arith.constant 0 : index
    %35 = vector.load %arg5[%c0_19, %c0_20, %c0_21] : memref<4x32x128xbf16, #tpu.memory_space<vmem>>, vector<1x32x128xbf16>
    %36 = vector.shape_cast %35 : vector<1x32x128xbf16> to vector<32x128xbf16>
    %cst_22 = arith.constant dense<0.000000e+00> : vector<32x128xf32>
    %37 = tpu.matmul %34, %36, %cst_22 {dimension_numbers = #tpu.dot_dimension_numbers<[1], [0], [0], [1], [0, 0, 1, 1], [], []>} : vector<32x32xbf16>, vector<32x128xbf16>, vector<32x128xf32> -> vector<32x128xf32>
    %38 = arith.addf %2, %37 : vector<32x128xf32>
    %c1 = arith.constant 1 : index
    %c0_23 = arith.constant 0 : index
    %c0_24 = arith.constant 0 : index
    %39 = vector.load %arg2[%c1, %c0_23, %c0_24] : memref<4x128x32xbf16, #tpu.memory_space<vmem>>, vector<1x128x32xbf16>
    %40 = vector.shape_cast %39 : vector<1x128x32xbf16> to vector<128x32xbf16>
    %cst_25 = arith.constant dense<0.000000e+00> : vector<32x32xf32>
    %41 = tpu.matmul %1, %40, %cst_25 {dimension_numbers = #tpu.dot_dimension_numbers<[1], [0], [0], [1], [0, 0, 1, 1], [], []>} : vector<32x128xbf16>, vector<128x32xbf16>, vector<32x32xf32> -> vector<32x32xf32>
    %c1_26 = arith.constant 1 : index
    %c0_27 = arith.constant 0 : index
    %c0_28 = arith.constant 0 : index
    %42 = vector.load %arg3[%c1_26, %c0_27, %c0_28] : memref<4x128x32xbf16, #tpu.memory_space<vmem>>, vector<1x128x32xbf16>
    %43 = vector.shape_cast %42 : vector<1x128x32xbf16> to vector<128x32xbf16>
    %cst_29 = arith.constant dense<0.000000e+00> : vector<32x32xf32>
    %44 = tpu.matmul %1, %43, %cst_29 {dimension_numbers = #tpu.dot_dimension_numbers<[1], [0], [0], [1], [0, 0, 1, 1], [], []>} : vector<32x128xbf16>, vector<128x32xbf16>, vector<32x32xf32> -> vector<32x32xf32>
    %cst_30 = arith.constant 0.0883883461 : f32
    %45 = vector.broadcast %cst_30 : f32 to vector<32x32xf32>
    %46 = arith.mulf %44, %45 : vector<32x32xf32>
    %c1_31 = arith.constant 1 : index
    %c0_32 = arith.constant 0 : index
    %c0_33 = arith.constant 0 : index
    %47 = vector.load %arg4[%c1_31, %c0_32, %c0_33] : memref<4x128x32xbf16, #tpu.memory_space<vmem>>, vector<1x128x32xbf16>
    %48 = vector.shape_cast %47 : vector<1x128x32xbf16> to vector<128x32xbf16>
    %cst_34 = arith.constant dense<0.000000e+00> : vector<32x32xf32>
    %49 = tpu.matmul %1, %48, %cst_34 {dimension_numbers = #tpu.dot_dimension_numbers<[1], [0], [0], [1], [0, 0, 1, 1], [], []>} : vector<32x128xbf16>, vector<128x32xbf16>, vector<32x32xf32> -> vector<32x32xf32>
    %50 = vector.shape_cast %41 : vector<32x32xf32> to vector<2x16x32xf32>
    %51 = arith.truncf %50 : vector<2x16x32xf32> to vector<2x16x32xbf16>
    %52 = vector.shape_cast %46 : vector<32x32xf32> to vector<2x16x32xf32>
    %53 = arith.truncf %52 : vector<2x16x32xf32> to vector<2x16x32xbf16>
    %54 = vector.shape_cast %49 : vector<32x32xf32> to vector<2x16x32xf32>
    %55 = arith.truncf %54 : vector<2x16x32xf32> to vector<2x16x32xbf16>
    "tpu.trace_start"() <{level = 10 : i32, message = "bqh,bkh->bqk"}> : () -> ()
    %cst_35 = arith.constant dense<0.000000e+00> : vector<2x16x16xf32>
    %56 = tpu.matmul %53, %51, %cst_35 {dimension_numbers = #tpu.dot_dimension_numbers<[2], [2], [1], [1], [0, 0, 0, 1, 1, 1], [0], [0]>} : vector<2x16x32xbf16>, vector<2x16x32xbf16>, vector<2x16x16xf32> -> vector<2x16x16xf32>
    "tpu.trace_stop"() : () -> ()
    %cst_36 = arith.constant dense<0xFF800000> : vector<2x16xf32>
    %57 = vector.multi_reduction <maximumf>, %56, %cst_36 [2] : vector<2x16x16xf32> to vector<2x16xf32>
    %58 = vector.shape_cast %57 : vector<2x16xf32> to vector<2x16x1xf32>
    %59 = vector.broadcast %58 : vector<2x16x1xf32> to vector<2x16x16xf32>
    %60 = arith.subf %56, %59 : vector<2x16x16xf32>
    %61 = math.exp %60 : vector<2x16x16xf32>
    %cst_37 = arith.constant dense<0.000000e+00> : vector<2x16xf32>
    %62 = vector.multi_reduction <add>, %61, %cst_37 [2] : vector<2x16x16xf32> to vector<2x16xf32>
    %63 = vector.shape_cast %62 : vector<2x16xf32> to vector<2x16x1xf32>
    %64 = tpu.reciprocal %63 {approx = true} : vector<2x16x1xf32> -> vector<2x16x1xf32>
    %65 = vector.broadcast %64 : vector<2x16x1xf32> to vector<2x16x16xf32>
    %66 = arith.mulf %61, %65 : vector<2x16x16xf32>
    %67 = arith.truncf %66 : vector<2x16x16xf32> to vector<2x16x16xbf16>
    "tpu.trace_start"() <{level = 10 : i32, message = "bqk,bkh->bqh"}> : () -> ()
    %cst_38 = arith.constant dense<0.000000e+00> : vector<2x16x32xf32>
    %68 = tpu.matmul %67, %55, %cst_38 {dimension_numbers = #tpu.dot_dimension_numbers<[2], [1], [1], [2], [0, 0, 0, 1, 1, 2], [0], [0]>} : vector<2x16x16xbf16>, vector<2x16x32xbf16>, vector<2x16x32xf32> -> vector<2x16x32xf32>
    "tpu.trace_stop"() : () -> ()
    %69 = vector.shape_cast %68 : vector<2x16x32xf32> to vector<32x32xf32>
    %70 = arith.truncf %69 : vector<32x32xf32> to vector<32x32xbf16>
    %c1_39 = arith.constant 1 : index
    %c0_40 = arith.constant 0 : index
    %c0_41 = arith.constant 0 : index
    %71 = vector.load %arg5[%c1_39, %c0_40, %c0_41] : memref<4x32x128xbf16, #tpu.memory_space<vmem>>, vector<1x32x128xbf16>
    %72 = vector.shape_cast %71 : vector<1x32x128xbf16> to vector<32x128xbf16>
    %cst_42 = arith.constant dense<0.000000e+00> : vector<32x128xf32>
    %73 = tpu.matmul %70, %72, %cst_42 {dimension_numbers = #tpu.dot_dimension_numbers<[1], [0], [0], [1], [0, 0, 1, 1], [], []>} : vector<32x32xbf16>, vector<32x128xbf16>, vector<32x128xf32> -> vector<32x128xf32>
    %74 = arith.addf %38, %73 : vector<32x128xf32>
    %c2 = arith.constant 2 : index
    %c0_43 = arith.constant 0 : index
    %c0_44 = arith.constant 0 : index
    %75 = vector.load %arg2[%c2, %c0_43, %c0_44] : memref<4x128x32xbf16, #tpu.memory_space<vmem>>, vector<1x128x32xbf16>
    %76 = vector.shape_cast %75 : vector<1x128x32xbf16> to vector<128x32xbf16>
    %cst_45 = arith.constant dense<0.000000e+00> : vector<32x32xf32>
    %77 = tpu.matmul %1, %76, %cst_45 {dimension_numbers = #tpu.dot_dimension_numbers<[1], [0], [0], [1], [0, 0, 1, 1], [], []>} : vector<32x128xbf16>, vector<128x32xbf16>, vector<32x32xf32> -> vector<32x32xf32>
    %c2_46 = arith.constant 2 : index
    %c0_47 = arith.constant 0 : index
    %c0_48 = arith.constant 0 : index
    %78 = vector.load %arg3[%c2_46, %c0_47, %c0_48] : memref<4x128x32xbf16, #tpu.memory_space<vmem>>, vector<1x128x32xbf16>
    %79 = vector.shape_cast %78 : vector<1x128x32xbf16> to vector<128x32xbf16>
    %cst_49 = arith.constant dense<0.000000e+00> : vector<32x32xf32>
    %80 = tpu.matmul %1, %79, %cst_49 {dimension_numbers = #tpu.dot_dimension_numbers<[1], [0], [0], [1], [0, 0, 1, 1], [], []>} : vector<32x128xbf16>, vector<128x32xbf16>, vector<32x32xf32> -> vector<32x32xf32>
    %cst_50 = arith.constant 0.0883883461 : f32
    %81 = vector.broadcast %cst_50 : f32 to vector<32x32xf32>
    %82 = arith.mulf %80, %81 : vector<32x32xf32>
    %c2_51 = arith.constant 2 : index
    %c0_52 = arith.constant 0 : index
    %c0_53 = arith.constant 0 : index
    %83 = vector.load %arg4[%c2_51, %c0_52, %c0_53] : memref<4x128x32xbf16, #tpu.memory_space<vmem>>, vector<1x128x32xbf16>
    %84 = vector.shape_cast %83 : vector<1x128x32xbf16> to vector<128x32xbf16>
    %cst_54 = arith.constant dense<0.000000e+00> : vector<32x32xf32>
    %85 = tpu.matmul %1, %84, %cst_54 {dimension_numbers = #tpu.dot_dimension_numbers<[1], [0], [0], [1], [0, 0, 1, 1], [], []>} : vector<32x128xbf16>, vector<128x32xbf16>, vector<32x32xf32> -> vector<32x32xf32>
    %86 = vector.shape_cast %77 : vector<32x32xf32> to vector<2x16x32xf32>
    %87 = arith.truncf %86 : vector<2x16x32xf32> to vector<2x16x32xbf16>
    %88 = vector.shape_cast %82 : vector<32x32xf32> to vector<2x16x32xf32>
    %89 = arith.truncf %88 : vector<2x16x32xf32> to vector<2x16x32xbf16>
    %90 = vector.shape_cast %85 : vector<32x32xf32> to vector<2x16x32xf32>
    %91 = arith.truncf %90 : vector<2x16x32xf32> to vector<2x16x32xbf16>
    "tpu.trace_start"() <{level = 10 : i32, message = "bqh,bkh->bqk"}> : () -> ()
    %cst_55 = arith.constant dense<0.000000e+00> : vector<2x16x16xf32>
    %92 = tpu.matmul %89, %87, %cst_55 {dimension_numbers = #tpu.dot_dimension_numbers<[2], [2], [1], [1], [0, 0, 0, 1, 1, 1], [0], [0]>} : vector<2x16x32xbf16>, vector<2x16x32xbf16>, vector<2x16x16xf32> -> vector<2x16x16xf32>
    "tpu.trace_stop"() : () -> ()
    %cst_56 = arith.constant dense<0xFF800000> : vector<2x16xf32>
    %93 = vector.multi_reduction <maximumf>, %92, %cst_56 [2] : vector<2x16x16xf32> to vector<2x16xf32>
    %94 = vector.shape_cast %93 : vector<2x16xf32> to vector<2x16x1xf32>
    %95 = vector.broadcast %94 : vector<2x16x1xf32> to vector<2x16x16xf32>
    %96 = arith.subf %92, %95 : vector<2x16x16xf32>
    %97 = math.exp %96 : vector<2x16x16xf32>
    %cst_57 = arith.constant dense<0.000000e+00> : vector<2x16xf32>
    %98 = vector.multi_reduction <add>, %97, %cst_57 [2] : vector<2x16x16xf32> to vector<2x16xf32>
    %99 = vector.shape_cast %98 : vector<2x16xf32> to vector<2x16x1xf32>
    %100 = tpu.reciprocal %99 {approx = true} : vector<2x16x1xf32> -> vector<2x16x1xf32>
    %101 = vector.broadcast %100 : vector<2x16x1xf32> to vector<2x16x16xf32>
    %102 = arith.mulf %97, %101 : vector<2x16x16xf32>
    %103 = arith.truncf %102 : vector<2x16x16xf32> to vector<2x16x16xbf16>
    "tpu.trace_start"() <{level = 10 : i32, message = "bqk,bkh->bqh"}> : () -> ()
    %cst_58 = arith.constant dense<0.000000e+00> : vector<2x16x32xf32>
    %104 = tpu.matmul %103, %91, %cst_58 {dimension_numbers = #tpu.dot_dimension_numbers<[2], [1], [1], [2], [0, 0, 0, 1, 1, 2], [0], [0]>} : vector<2x16x16xbf16>, vector<2x16x32xbf16>, vector<2x16x32xf32> -> vector<2x16x32xf32>
    "tpu.trace_stop"() : () -> ()
    %105 = vector.shape_cast %104 : vector<2x16x32xf32> to vector<32x32xf32>
    %106 = arith.truncf %105 : vector<32x32xf32> to vector<32x32xbf16>
    %c2_59 = arith.constant 2 : index
    %c0_60 = arith.constant 0 : index
    %c0_61 = arith.constant 0 : index
    %107 = vector.load %arg5[%c2_59, %c0_60, %c0_61] : memref<4x32x128xbf16, #tpu.memory_space<vmem>>, vector<1x32x128xbf16>
    %108 = vector.shape_cast %107 : vector<1x32x128xbf16> to vector<32x128xbf16>
    %cst_62 = arith.constant dense<0.000000e+00> : vector<32x128xf32>
    %109 = tpu.matmul %106, %108, %cst_62 {dimension_numbers = #tpu.dot_dimension_numbers<[1], [0], [0], [1], [0, 0, 1, 1], [], []>} : vector<32x32xbf16>, vector<32x128xbf16>, vector<32x128xf32> -> vector<32x128xf32>
    %110 = arith.addf %74, %109 : vector<32x128xf32>
    %c3 = arith.constant 3 : index
    %c0_63 = arith.constant 0 : index
    %c0_64 = arith.constant 0 : index
    %111 = vector.load %arg2[%c3, %c0_63, %c0_64] : memref<4x128x32xbf16, #tpu.memory_space<vmem>>, vector<1x128x32xbf16>
    %112 = vector.shape_cast %111 : vector<1x128x32xbf16> to vector<128x32xbf16>
    %cst_65 = arith.constant dense<0.000000e+00> : vector<32x32xf32>
    %113 = tpu.matmul %1, %112, %cst_65 {dimension_numbers = #tpu.dot_dimension_numbers<[1], [0], [0], [1], [0, 0, 1, 1], [], []>} : vector<32x128xbf16>, vector<128x32xbf16>, vector<32x32xf32> -> vector<32x32xf32>
    %c3_66 = arith.constant 3 : index
    %c0_67 = arith.constant 0 : index
    %c0_68 = arith.constant 0 : index
    %114 = vector.load %arg3[%c3_66, %c0_67, %c0_68] : memref<4x128x32xbf16, #tpu.memory_space<vmem>>, vector<1x128x32xbf16>
    %115 = vector.shape_cast %114 : vector<1x128x32xbf16> to vector<128x32xbf16>
    %cst_69 = arith.constant dense<0.000000e+00> : vector<32x32xf32>
    %116 = tpu.matmul %1, %115, %cst_69 {dimension_numbers = #tpu.dot_dimension_numbers<[1], [0], [0], [1], [0, 0, 1, 1], [], []>} : vector<32x128xbf16>, vector<128x32xbf16>, vector<32x32xf32> -> vector<32x32xf32>
    %cst_70 = arith.constant 0.0883883461 : f32
    %117 = vector.broadcast %cst_70 : f32 to vector<32x32xf32>
    %118 = arith.mulf %116, %117 : vector<32x32xf32>
    %c3_71 = arith.constant 3 : index
    %c0_72 = arith.constant 0 : index
    %c0_73 = arith.constant 0 : index
    %119 = vector.load %arg4[%c3_71, %c0_72, %c0_73] : memref<4x128x32xbf16, #tpu.memory_space<vmem>>, vector<1x128x32xbf16>
    %120 = vector.shape_cast %119 : vector<1x128x32xbf16> to vector<128x32xbf16>
    %cst_74 = arith.constant dense<0.000000e+00> : vector<32x32xf32>
    %121 = tpu.matmul %1, %120, %cst_74 {dimension_numbers = #tpu.dot_dimension_numbers<[1], [0], [0], [1], [0, 0, 1, 1], [], []>} : vector<32x128xbf16>, vector<128x32xbf16>, vector<32x32xf32> -> vector<32x32xf32>
    %122 = vector.shape_cast %113 : vector<32x32xf32> to vector<2x16x32xf32>
    %123 = arith.truncf %122 : vector<2x16x32xf32> to vector<2x16x32xbf16>
    %124 = vector.shape_cast %118 : vector<32x32xf32> to vector<2x16x32xf32>
    %125 = arith.truncf %124 : vector<2x16x32xf32> to vector<2x16x32xbf16>
    %126 = vector.shape_cast %121 : vector<32x32xf32> to vector<2x16x32xf32>
    %127 = arith.truncf %126 : vector<2x16x32xf32> to vector<2x16x32xbf16>
    "tpu.trace_start"() <{level = 10 : i32, message = "bqh,bkh->bqk"}> : () -> ()
    %cst_75 = arith.constant dense<0.000000e+00> : vector<2x16x16xf32>
    %128 = tpu.matmul %125, %123, %cst_75 {dimension_numbers = #tpu.dot_dimension_numbers<[2], [2], [1], [1], [0, 0, 0, 1, 1, 1], [0], [0]>} : vector<2x16x32xbf16>, vector<2x16x32xbf16>, vector<2x16x16xf32> -> vector<2x16x16xf32>
    "tpu.trace_stop"() : () -> ()
    %cst_76 = arith.constant dense<0xFF800000> : vector<2x16xf32>
    %129 = vector.multi_reduction <maximumf>, %128, %cst_76 [2] : vector<2x16x16xf32> to vector<2x16xf32>
    %130 = vector.shape_cast %129 : vector<2x16xf32> to vector<2x16x1xf32>
    %131 = vector.broadcast %130 : vector<2x16x1xf32> to vector<2x16x16xf32>
    %132 = arith.subf %128, %131 : vector<2x16x16xf32>
    %133 = math.exp %132 : vector<2x16x16xf32>
    %cst_77 = arith.constant dense<0.000000e+00> : vector<2x16xf32>
    %134 = vector.multi_reduction <add>, %133, %cst_77 [2] : vector<2x16x16xf32> to vector<2x16xf32>
    %135 = vector.shape_cast %134 : vector<2x16xf32> to vector<2x16x1xf32>
    %136 = tpu.reciprocal %135 {approx = true} : vector<2x16x1xf32> -> vector<2x16x1xf32>
    %137 = vector.broadcast %136 : vector<2x16x1xf32> to vector<2x16x16xf32>
    %138 = arith.mulf %133, %137 : vector<2x16x16xf32>
    %139 = arith.truncf %138 : vector<2x16x16xf32> to vector<2x16x16xbf16>
    "tpu.trace_start"() <{level = 10 : i32, message = "bqk,bkh->bqh"}> : () -> ()
    %cst_78 = arith.constant dense<0.000000e+00> : vector<2x16x32xf32>
    %140 = tpu.matmul %139, %127, %cst_78 {dimension_numbers = #tpu.dot_dimension_numbers<[2], [1], [1], [2], [0, 0, 0, 1, 1, 2], [0], [0]>} : vector<2x16x16xbf16>, vector<2x16x32xbf16>, vector<2x16x32xf32> -> vector<2x16x32xf32>
    "tpu.trace_stop"() : () -> ()
    %141 = vector.shape_cast %140 : vector<2x16x32xf32> to vector<32x32xf32>
    %142 = arith.truncf %141 : vector<32x32xf32> to vector<32x32xbf16>
    %c3_79 = arith.constant 3 : index
    %c0_80 = arith.constant 0 : index
    %c0_81 = arith.constant 0 : index
    %143 = vector.load %arg5[%c3_79, %c0_80, %c0_81] : memref<4x32x128xbf16, #tpu.memory_space<vmem>>, vector<1x32x128xbf16>
    %144 = vector.shape_cast %143 : vector<1x32x128xbf16> to vector<32x128xbf16>
    %cst_82 = arith.constant dense<0.000000e+00> : vector<32x128xf32>
    %145 = tpu.matmul %142, %144, %cst_82 {dimension_numbers = #tpu.dot_dimension_numbers<[1], [0], [0], [1], [0, 0, 1, 1], [], []>} : vector<32x32xbf16>, vector<32x128xbf16>, vector<32x128xf32> -> vector<32x128xf32>
    %146 = arith.addf %110, %145 : vector<32x128xf32>
    %c0_83 = arith.constant 0 : index
    %c0_84 = arith.constant 0 : index
    %147 = vector.load %arg6[%c0_83, %c0_84] : memref<1x128xf32, #tpu.memory_space<vmem>>, vector<1x128xf32>
    %148 = vector.broadcast %147 : vector<1x128xf32> to vector<32x128xf32>
    %149 = arith.addf %146, %148 : vector<32x128xf32>
    %150 = vector.shape_cast %149 : vector<32x128xf32> to vector<2x16x128xf32>
    %c0_85 = arith.constant 0 : index
    %c0_86 = arith.constant 0 : index
    %c0_87 = arith.constant 0 : index
    %151 = vector.load %arg7[%c0_85, %c0_86, %c0_87] : memref<2x16x128xf32, #tpu.memory_space<vmem>>, vector<2x16x128xf32>
    tpu.vector_store %arg7[%c0_85, %c0_86, %c0_87], %150 {strides = array<i32>} : memref<2x16x128xf32, #tpu.memory_space<vmem>>, vector<2x16x128xf32>,
    return
  }
  func.func @transform_0(%arg0: i32) -> (i32, i32, i32) {
    %c0_i32 = arith.constant 0 : i32
    %c0_i32_0 = arith.constant 0 : i32
    %c0_i32_1 = arith.constant 0 : i32
    return %arg0, %c0_i32, %c0_i32_0 : i32, i32, i32
  }
  func.func @transform_1(%arg0: i32) -> (i32, i32, i32) {
    %c0_i32 = arith.constant 0 : i32
    %c0_i32_0 = arith.constant 0 : i32
    %c0_i32_1 = arith.constant 0 : i32
    %c0_i32_2 = arith.constant 0 : i32
    return %c0_i32, %c0_i32_0, %c0_i32_1 : i32, i32, i32
  }
  func.func @transform_2(%arg0: i32) -> (i32, i32, i32) {
    %c0_i32 = arith.constant 0 : i32
    %c0_i32_0 = arith.constant 0 : i32
    %c0_i32_1 = arith.constant 0 : i32
    %c0_i32_2 = arith.constant 0 : i32
    return %c0_i32, %c0_i32_0, %c0_i32_1 : i32, i32, i32
  }
  func.func @transform_3(%arg0: i32) -> (i32, i32, i32) {
    %c0_i32 = arith.constant 0 : i32
    %c0_i32_0 = arith.constant 0 : i32
    %c0_i32_1 = arith.constant 0 : i32
    %c0_i32_2 = arith.constant 0 : i32
    return %c0_i32, %c0_i32_0, %c0_i32_1 : i32, i32, i32
  }
  func.func @transform_4(%arg0: i32) -> (i32, i32, i32) {
    %c0_i32 = arith.constant 0 : i32
    %c0_i32_0 = arith.constant 0 : i32
    %c0_i32_1 = arith.constant 0 : i32
    %c0_i32_2 = arith.constant 0 : i32
    return %c0_i32, %c0_i32_0, %c0_i32_1 : i32, i32, i32
  }
  func.func @transform_5(%arg0: i32) -> (i32, i32) {
    %c0_i32 = arith.constant 0 : i32
    %c0_i32_0 = arith.constant 0 : i32
    %c0_i32_1 = arith.constant 0 : i32
    return %c0_i32, %c0_i32_0 : i32, i32
  }
  func.func @transform_6(%arg0: i32) -> (i32, i32, i32) {
    %c0_i32 = arith.constant 0 : i32
    %c0_i32_0 = arith.constant 0 : i32
    %c0_i32_1 = arith.constant 0 : i32
    return %arg0, %c0_i32, %c0_i32_0 : i32, i32, i32
  }
}

</mosaic_0001>

<llo_original>
// kernel: tpu_custom_call.1
$region0: #{tpu_custom_call.1}
  #allocation0 [shape = 'u32[]', space=smem, size = 0x4, offset = 0x4, fixed_abs, tag = 'smem constant byte address 0x4 - core index']
  #allocation1 [shape = 'u32[144,128]{1,0:T(1,128)}', space=vmem, size = 0x12000, scoped, tag = 'internal scratch']
  %s0 = inlined_call_operand.vmem [shape: bf16[2,16,128], index: 0, kind: input, shape index: {}]
  %s1 = inlined_call_operand.vmem [shape: bf16[4,128,32], index: 1, kind: input, shape index: {}]
  %s2 = inlined_call_operand.vmem [shape: bf16[4,128,32], index: 2, kind: input, shape index: {}]
  %s3 = inlined_call_operand.vmem [shape: bf16[4,128,32], index: 3, kind: input, shape index: {}]
  %s4 = inlined_call_operand.vmem [shape: bf16[4,32,128], index: 4, kind: input, shape index: {}]
  %s5 = inlined_call_operand.vmem [shape: f32[1,128], index: 5, kind: input, shape index: {}]
  %s6 = inlined_call_operand.hbm [shape: f32[2,16,128], index: 6, kind: output, shape index: {}]
  %s7 = sld [smem:[#allocation0]]
  $region34: #{tpu_custom_call.1} parent=0
    _
  %s9 = ssub.s32 1, %s7
  %s10 = scalar_select 0, %s9, %s7
  $region1: #{tpu_custom_call.1} parent=0
    #allocation2 [shape = 'u8[16384]{0}', space=vmem, size = 0x4000, scoped, tag = 'output window, operand 0, single buffered']
    #allocation3 [shape = 's32[1]{0}', space=sflag, size = 0x4, scoped, tag = 'scoped memory for tpu_custom_call.1']
    %11 = vsyncpa [#allocation3], 0
    // Predicated region
    $region2: #{tpu_custom_call.1} parent=1 // pred_check
      _
    $region3: #{tpu_custom_call.1} parent=1 // pred_check_branch
      %13 = sbr.rel (0) target = $region5
    $region4: #{tpu_custom_call.1} parent=1 // pred_region
      _
    $region5: #{tpu_custom_call.1} parent=1 // pred_fallthru
      _
    // Predicated region
    $region6: #{tpu_custom_call.1} parent=1 // pred_check
      _
    $region7: #{tpu_custom_call.1} parent=1 // pred_check_branch
      %15 = sbr.rel (0) target = $region9
    $region8: #{tpu_custom_call.1} parent=1 // pred_region
      _
    $region9: #{tpu_custom_call.1} parent=1 // pred_fallthru
      _
    // Predicated region
    $region10: #{tpu_custom_call.1} parent=1 // pred_check
      _
    $region11: #{tpu_custom_call.1} parent=1 // pred_check_branch
      %17 = sbr.rel (0) target = $region13
    $region12: #{tpu_custom_call.1} parent=1 // pred_region
      _
    $region13: #{tpu_custom_call.1} parent=1 // pred_fallthru
      _
    // Predicated region
    $region14: #{tpu_custom_call.1} parent=1 // pred_check
      _
    $region15: #{tpu_custom_call.1} parent=1 // pred_check_branch
      %19 = sbr.rel (0) target = $region17
    $region16: #{tpu_custom_call.1} parent=1 // pred_region
      _
    $region17: #{tpu_custom_call.1} parent=1 // pred_fallthru
      _
    // Predicated region
    $region18: #{tpu_custom_call.1} parent=1 // pred_check
      _
    $region19: #{tpu_custom_call.1} parent=1 // pred_check_branch
      %21 = sbr.rel (0) target = $region21
    $region20: #{tpu_custom_call.1} parent=1 // pred_region
      _
    $region21: #{tpu_custom_call.1} parent=1 // pred_fallthru
      _
    // Predicated region
    $region22: #{tpu_custom_call.1} parent=1 // pred_check
      _
    $region23: #{tpu_custom_call.1} parent=1 // pred_check_branch
      %23 = sbr.rel (0) target = $region25
    $region24: #{tpu_custom_call.1} parent=1 // pred_region
      _
    $region25: #{tpu_custom_call.1} parent=1 // pred_fallthru
      _
    %v25 = vld [vmem:[%s0] sm:$0xf]
    %v26 = vld [vmem:[%s0 + $0x4] sm:$0xf]
    %v27 = vld [vmem:[%s0 + $0x8] sm:$0xf]
    %v28 = vld [vmem:[%s0 + $0xc] sm:$0xf]
    %v29 = vld [vmem:[%s1] sm:$0xf]
    %v30 = vld [vmem:[%s1 + $0x4] sm:$0xf]
    %v31 = vld [vmem:[%s1 + $0x8] sm:$0xf]
    %v32 = vld [vmem:[%s1 + $0xc] sm:$0xf]
    %v33 = vld [vmem:[%s1 + $0x10] sm:$0xf]
    %v34 = vld [vmem:[%s1 + $0x14] sm:$0xf]
    %v35 = vld [vmem:[%s1 + $0x18] sm:$0xf]
    %v36 = vld [vmem:[%s1 + $0x1c] sm:$0xf]
    %v37 = vld [vmem:[%s1 + $0x20] sm:$0xf]
    %v38 = vld [vmem:[%s1 + $0x24] sm:$0xf]
    %v39 = vld [vmem:[%s1 + $0x28] sm:$0xf]
    %v40 = vld [vmem:[%s1 + $0x2c] sm:$0xf]
    %v41 = vld [vmem:[%s1 + $0x30] sm:$0xf]
    %v42 = vld [vmem:[%s1 + $0x34] sm:$0xf]
    %v43 = vld [vmem:[%s1 + $0x38] sm:$0xf]
    %v44 = vld [vmem:[%s1 + $0x3c] sm:$0xf]
    %v49 = vunpack.c.l.b16 %v25
    %v50 = vunpack.c.l.b16 %v26
    %v51 = vunpack.c.l.b16 %v27
    %v52 = vunpack.c.l.b16 %v28
    %v53 = vpack.c.b16 %v50, %v49
    %v54 = vpack.c.b16 %v52, %v51
    %v73 = vunpack.c.l.b16 %v29
    %v74 = vunpack.c.l.b16 %v30
    %v75 = vunpack.c.l.b16 %v31
    %v76 = vunpack.c.l.b16 %v32
    %v77 = vunpack.c.l.b16 %v33
    %v78 = vunpack.c.l.b16 %v34
    %v79 = vunpack.c.l.b16 %v35
    %v80 = vunpack.c.l.b16 %v36
    %v81 = vunpack.c.l.b16 %v37
    %v82 = vunpack.c.l.b16 %v38
    %v83 = vunpack.c.l.b16 %v39
    %v84 = vunpack.c.l.b16 %v40
    %v85 = vunpack.c.l.b16 %v41
    %v86 = vunpack.c.l.b16 %v42
    %v87 = vunpack.c.l.b16 %v43
    %v88 = vunpack.c.l.b16 %v44
    %v89 = vpack.c.b16 %v74, %v73
    %v90 = vpack.c.b16 %v76, %v75
    %v91 = vpack.c.b16 %v78, %v77
    %v92 = vpack.c.b16 %v80, %v79
    %v93 = vpack.c.b16 %v82, %v81
    %v94 = vpack.c.b16 %v84, %v83
    %v95 = vpack.c.b16 %v86, %v85
    %v96 = vpack.c.b16 %v88, %v87
    %105 = vmatprep.subr.bf16.mxu0 0
    %106 = vmatpush1.bf16.msra.mxu0 %v96
    %107 = vmatprep.subr.bf16.mxu0 0
    %108 = vmatpush1.bf16.msra.mxu0 %v95
    %109 = vmatprep.subr.bf16.mxu0 0
    %110 = vmatpush1.bf16.msra.mxu0 %v94
    %111 = vmatprep.subr.bf16.mxu0 0
    %112 = vmatpush1.bf16.msra.mxu0 %v93
    %113 = vmatprep.subr.bf16.mxu0 0
    %114 = vmatpush1.bf16.msra.mxu0 %v92
    %115 = vmatprep.subr.bf16.mxu0 0
    %116 = vmatpush1.bf16.msra.mxu0 %v91
    %117 = vmatprep.subr.bf16.mxu0 0
    %118 = vmatpush1.bf16.msra.mxu0 %v90
    %119 = vmatprep.subr.bf16.mxu0 0
    %120 = vmatpush1.bf16.msra.mxu0 %v89
    %121 = vmatprep.subr.bf16.mxu0 0
    %122 = vmatpush2.bf16.msra.mxu0 0
    %123 = vmatprep.subr.bf16.mxu0 0
    %124 = vmatpush2.bf16.msra.mxu0 0
    %125 = vmatprep.subr.bf16.mxu0 0
    %126 = vmatpush2.bf16.msra.mxu0 0
    %127 = vmatprep.subr.bf16.mxu0 0
    %128 = vmatpush2.bf16.msra.mxu0 0
    %129 = vmatprep.subr.bf16.mxu0 0
    %130 = vmatpush2.bf16.msra.mxu0 0
    %131 = vmatprep.subr.bf16.mxu0 0
    %132 = vmatpush2.bf16.msra.mxu0 0
    %133 = vmatprep.subr.bf16.mxu0 0
    %134 = vmatpush2.bf16.msra.mxu0 0
    %135 = vmatprep.subr.bf16.mxu0 0
    %136 = vmatpush2.bf16.msra.mxu0 0
    %137 = vmatprep.mubr.bf16.mxu0 0
    %138 = vmatmul.mubr.bf16.gmra.mxu0 %v53
    %v139 = vpop.f32.mrf.mxu0
    %v140 = vadd.f32 0.0, %v139
    %v141 = vpop.f32.mrf.mxu0
    %v142 = vpop.f32.mrf.mxu0
    %v143 = vadd.f32 0.0, %v142
    %v144 = vpop.f32.mrf.mxu0
    %145 = vmatprep.mubr.bf16.mxu0 0
    %146 = vmatmul.mubr.bf16.gmra.mxu0 %v54
    %v147 = vpop.f32.mrf.mxu0
    %v148 = vadd.f32 0.0, %v147
    %v149 = vpop.f32.mrf.mxu0
    %v150 = vpop.f32.mrf.mxu0
    %v151 = vadd.f32 0.0, %v150
    %v152 = vpop.f32.mrf.mxu0
    %153 = vdwg.mxu0
    %v154 = vld [vmem:[%s2] sm:$0xf]
    %v155 = vld [vmem:[%s2 + $0x4] sm:$0xf]
    %v156 = vld [vmem:[%s2 + $0x8] sm:$0xf]
    %v157 = vld [vmem:[%s2 + $0xc] sm:$0xf]
    %v158 = vld [vmem:[%s2 + $0x10] sm:$0xf]
    %v159 = vld [vmem:[%s2 + $0x14] sm:$0xf]
    %v160 = vld [vmem:[%s2 + $0x18] sm:$0xf]
    %v161 = vld [vmem:[%s2 + $0x1c] sm:$0xf]
    %v162 = vld [vmem:[%s2 + $0x20] sm:$0xf]
    %v163 = vld [vmem:[%s2 + $0x24] sm:$0xf]
    %v164 = vld [vmem:[%s2 + $0x28] sm:$0xf]
    %v165 = vld [vmem:[%s2 + $0x2c] sm:$0xf]
    %v166 = vld [vmem:[%s2 + $0x30] sm:$0xf]
    %v167 = vld [vmem:[%s2 + $0x34] sm:$0xf]
    %v168 = vld [vmem:[%s2 + $0x38] sm:$0xf]
    %v169 = vld [vmem:[%s2 + $0x3c] sm:$0xf]
    %v186 = vunpack.c.l.b16 %v154
    %v187 = vunpack.c.l.b16 %v155
    %v188 = vunpack.c.l.b16 %v156
    %v189 = vunpack.c.l.b16 %v157
    %v190 = vunpack.c.l.b16 %v158
    %v191 = vunpack.c.l.b16 %v159
    %v192 = vunpack.c.l.b16 %v160
    %v193 = vunpack.c.l.b16 %v161
    %v194 = vunpack.c.l.b16 %v162
    %v195 = vunpack.c.l.b16 %v163
    %v196 = vunpack.c.l.b16 %v164
    %v197 = vunpack.c.l.b16 %v165
    %v198 = vunpack.c.l.b16 %v166
    %v199 = vunpack.c.l.b16 %v167
    %v200 = vunpack.c.l.b16 %v168
    %v201 = vunpack.c.l.b16 %v169
    %v202 = vpack.c.b16 %v187, %v186
    %v203 = vpack.c.b16 %v189, %v188
    %v204 = vpack.c.b16 %v191, %v190
    %v205 = vpack.c.b16 %v193, %v192
    %v206 = vpack.c.b16 %v195, %v194
    %v207 = vpack.c.b16 %v197, %v196
    %v208 = vpack.c.b16 %v199, %v198
    %v209 = vpack.c.b16 %v201, %v200
    %218 = vmatprep.subr.bf16.mxu0 0
    %219 = vmatpush1.bf16.msra.mxu0 %v209
    %220 = vmatprep.subr.bf16.mxu0 0
    %221 = vmatpush1.bf16.msra.mxu0 %v208
    %222 = vmatprep.subr.bf16.mxu0 0
    %223 = vmatpush1.bf16.msra.mxu0 %v207
    %224 = vmatprep.subr.bf16.mxu0 0
    %225 = vmatpush1.bf16.msra.mxu0 %v206
    %226 = vmatprep.subr.bf16.mxu0 0
    %227 = vmatpush1.bf16.msra.mxu0 %v205
    %228 = vmatprep.subr.bf16.mxu0 0
    %229 = vmatpush1.bf16.msra.mxu0 %v204
    %230 = vmatprep.subr.bf16.mxu0 0
    %231 = vmatpush1.bf16.msra.mxu0 %v203
    %232 = vmatprep.subr.bf16.mxu0 0
    %233 = vmatpush1.bf16.msra.mxu0 %v202
    %234 = vmatprep.subr.bf16.mxu0 0
    %235 = vmatpush2.bf16.msra.mxu0 0
    %236 = vmatprep.subr.bf16.mxu0 0
    %237 = vmatpush2.bf16.msra.mxu0 0
    %238 = vmatprep.subr.bf16.mxu0 0
    %239 = vmatpush2.bf16.msra.mxu0 0
    %240 = vmatprep.subr.bf16.mxu0 0
    %241 = vmatpush2.bf16.msra.mxu0 0
    %242 = vmatprep.subr.bf16.mxu0 0
    %243 = vmatpush2.bf16.msra.mxu0 0
    %244 = vmatprep.subr.bf16.mxu0 0
    %245 = vmatpush2.bf16.msra.mxu0 0
    %246 = vmatprep.subr.bf16.mxu0 0
    %247 = vmatpush2.bf16.msra.mxu0 0
    %248 = vmatprep.subr.bf16.mxu0 0
    %249 = vmatpush2.bf16.msra.mxu0 0
    %250 = vmatprep.mubr.bf16.mxu0 0
    %251 = vmatmul.mubr.bf16.gmra.mxu0 %v53
    %v252 = vpop.f32.mrf.mxu0
    %v253 = vadd.f32 0.0, %v252
    %v254 = vpop.f32.mrf.mxu0
    %v255 = vpop.f32.mrf.mxu0
    %v256 = vadd.f32 0.0, %v255
    %v257 = vpop.f32.mrf.mxu0
    %258 = vmatprep.mubr.bf16.mxu0 0
    %259 = vmatmul.mubr.bf16.gmra.mxu0 %v54
    %v260 = vpop.f32.mrf.mxu0
    %v261 = vadd.f32 0.0, %v260
    %v262 = vpop.f32.mrf.mxu0
    %v263 = vpop.f32.mrf.mxu0
    %v264 = vadd.f32 0.0, %v263
    %v265 = vpop.f32.mrf.mxu0
    %266 = vdwg.mxu0
    %v267 = vmul.f32 %v253, 0.088388346
    %v268 = vmul.f32 %v256, 0.088388346
    %v269 = vmul.f32 %v261, 0.088388346
    %v270 = vmul.f32 %v264, 0.088388346
    %v271 = vld [vmem:[%s3] sm:$0xf]
    %v272 = vld [vmem:[%s3 + $0x4] sm:$0xf]
    %v273 = vld [vmem:[%s3 + $0x8] sm:$0xf]
    %v274 = vld [vmem:[%s3 + $0xc] sm:$0xf]
    %v275 = vld [vmem:[%s3 + $0x10] sm:$0xf]
    %v276 = vld [vmem:[%s3 + $0x14] sm:$0xf]
    %v277 = vld [vmem:[%s3 + $0x18] sm:$0xf]
    %v278 = vld [vmem:[%s3 + $0x1c] sm:$0xf]
    %v279 = vld [vmem:[%s3 + $0x20] sm:$0xf]
    %v280 = vld [vmem:[%s3 + $0x24] sm:$0xf]
    %v281 = vld [vmem:[%s3 + $0x28] sm:$0xf]
    %v282 = vld [vmem:[%s3 + $0x2c] sm:$0xf]
    %v283 = vld [vmem:[%s3 + $0x30] sm:$0xf]
    %v284 = vld [vmem:[%s3 + $0x34] sm:$0xf]
    %v285 = vld [vmem:[%s3 + $0x38] sm:$0xf]
    %v286 = vld [vmem:[%s3 + $0x3c] sm:$0xf]
    %v303 = vunpack.c.l.b16 %v271
    %v304 = vunpack.c.l.b16 %v272
    %v305 = vunpack.c.l.b16 %v273
    %v306 = vunpack.c.l.b16 %v274
    %v307 = vunpack.c.l.b16 %v275
    %v308 = vunpack.c.l.b16 %v276
    %v309 = vunpack.c.l.b16 %v277
    %v310 = vunpack.c.l.b16 %v278
    %v311 = vunpack.c.l.b16 %v279
    %v312 = vunpack.c.l.b16 %v280
    %v313 = vunpack.c.l.b16 %v281
    %v314 = vunpack.c.l.b16 %v282
    %v315 = vunpack.c.l.b16 %v283
    %v316 = vunpack.c.l.b16 %v284
    %v317 = vunpack.c.l.b16 %v285
    %v318 = vunpack.c.l.b16 %v286
    %v319 = vpack.c.b16 %v304, %v303
    %v320 = vpack.c.b16 %v306, %v305
    %v321 = vpack.c.b16 %v308, %v307
    %v322 = vpack.c.b16 %v310, %v309
    %v323 = vpack.c.b16 %v312, %v311
    %v324 = vpack.c.b16 %v314, %v313
    %v325 = vpack.c.b16 %v316, %v315
    %v326 = vpack.c.b16 %v318, %v317
    %335 = vmatprep.subr.bf16.mxu0 0
    %336 = vmatpush1.bf16.msra.mxu0 %v326
    %337 = vmatprep.subr.bf16.mxu0 0
    %338 = vmatpush1.bf16.msra.mxu0 %v325
    %339 = vmatprep.subr.bf16.mxu0 0
    %340 = vmatpush1.bf16.msra.mxu0 %v324
    %341 = vmatprep.subr.bf16.mxu0 0
    %342 = vmatpush1.bf16.msra.mxu0 %v323
    %343 = vmatprep.subr.bf16.mxu0 0
    %344 = vmatpush1.bf16.msra.mxu0 %v322
    %345 = vmatprep.subr.bf16.mxu0 0
    %346 = vmatpush1.bf16.msra.mxu0 %v321
    %347 = vmatprep.subr.bf16.mxu0 0
    %348 = vmatpush1.bf16.msra.mxu0 %v320
    %349 = vmatprep.subr.bf16.mxu0 0
    %350 = vmatpush1.bf16.msra.mxu0 %v319
    %351 = vmatprep.subr.bf16.mxu0 0
    %352 = vmatpush2.bf16.msra.mxu0 0
    %353 = vmatprep.subr.bf16.mxu0 0
    %354 = vmatpush2.bf16.msra.mxu0 0
    %355 = vmatprep.subr.bf16.mxu0 0
    %356 = vmatpush2.bf16.msra.mxu0 0
    %357 = vmatprep.subr.bf16.mxu0 0
    %358 = vmatpush2.bf16.msra.mxu0 0
    %359 = vmatprep.subr.bf16.mxu0 0
    %360 = vmatpush2.bf16.msra.mxu0 0
    %361 = vmatprep.subr.bf16.mxu0 0
    %362 = vmatpush2.bf16.msra.mxu0 0
    %363 = vmatprep.subr.bf16.mxu0 0
    %364 = vmatpush2.bf16.msra.mxu0 0
    %365 = vmatprep.subr.bf16.mxu0 0
    %366 = vmatpush2.bf16.msra.mxu0 0
    %367 = vmatprep.mubr.bf16.mxu0 0
    %368 = vmatmul.mubr.bf16.gmra.mxu0 %v53
    %v369 = vpop.f32.mrf.mxu0
    %v370 = vadd.f32 0.0, %v369
    %v371 = vpop.f32.mrf.mxu0
    %v372 = vpop.f32.mrf.mxu0
    %v373 = vadd.f32 0.0, %v372
    %v374 = vpop.f32.mrf.mxu0
    %375 = vmatprep.mubr.bf16.mxu0 0
    %376 = vmatmul.mubr.bf16.gmra.mxu0 %v54
    %v377 = vpop.f32.mrf.mxu0
    %v378 = vadd.f32 0.0, %v377
    %v379 = vpop.f32.mrf.mxu0
    %v380 = vpop.f32.mrf.mxu0
    %v381 = vadd.f32 0.0, %v380
    %v382 = vpop.f32.mrf.mxu0
    %383 = vdwg.mxu0
    %v384 = vpack.c.bf16 %v143, %v140
    %v385 = vpack.c.bf16 %v151, %v148
    %v386 = vpack.c.bf16 %v268, %v267
    %v387 = vpack.c.bf16 %v270, %v269
    %v388 = vpack.c.bf16 %v373, %v370
    %v389 = vpack.c.bf16 %v381, %v378
    %vm390 = vcmask 261120
    %v392 = vsel %vm390, %v386, 0
    %v395 = vsel %vm390, %v384, 0
    %397 = vmatprep.subr.bf16.mxu0 0
    %398 = vmatpush1.bf16.xpose.msra.mxu0 0
    %399 = vmatprep.subr.bf16.mxu0 0
    %400 = vmatpush1.bf16.xpose.msra.mxu0 0
    %401 = vmatprep.subr.bf16.mxu0 0
    %402 = vmatpush1.bf16.xpose.msra.mxu0 0
    %403 = vmatprep.subr.bf16.mxu0 0
    %404 = vmatpush1.bf16.xpose.msra.mxu0 0
    %405 = vmatprep.subr.bf16.mxu0 0
    %406 = vmatpush1.bf16.xpose.msra.mxu0 0
    %407 = vmatprep.subr.bf16.mxu0 0
    %408 = vmatpush1.bf16.xpose.msra.mxu0 0
    %409 = vmatprep.subr.bf16.mxu0 0
    %410 = vmatpush1.bf16.xpose.msra.mxu0 0
    %411 = vmatprep.subr.bf16.mxu0 0
    %412 = vmatpush1.bf16.xpose.msra.mxu0 %v395
    %413 = vmatprep.subr.bf16.mxu0 0
    %414 = vmatpush2.bf16.xpose.msra.mxu0 0
    %415 = vmatprep.subr.bf16.mxu0 0
    %416 = vmatpush2.bf16.xpose.msra.mxu0 0
    %417 = vmatprep.subr.bf16.mxu0 0
    %418 = vmatpush2.bf16.xpose.msra.mxu0 0
    %419 = vmatprep.subr.bf16.mxu0 0
    %420 = vmatpush2.bf16.xpose.msra.mxu0 0
    %421 = vmatprep.subr.bf16.mxu0 0
    %422 = vmatpush2.bf16.xpose.msra.mxu0 0
    %423 = vmatprep.subr.bf16.mxu0 0
    %424 = vmatpush2.bf16.xpose.msra.mxu0 0
    %425 = vmatprep.subr.bf16.mxu0 0
    %426 = vmatpush2.bf16.xpose.msra.mxu0 0
    %427 = vmatprep.subr.bf16.mxu0 0
    %428 = vmatpush2.bf16.xpose.msra.mxu0 0
    %429 = vmatprep.mubr.bf16.mxu0 0
    %430 = vmatmul.mubr.bf16.gmra.mxu0 %v392
    %v431 = vpop.f32.mrf.mxu0
    %v432 = vadd.f32 0.0, %v431
    %v433 = vpop.f32.mrf.mxu0
    %v434 = vpop.f32.mrf.mxu0
    %v435 = vadd.f32 0.0, %v434
    %v436 = vpop.f32.mrf.mxu0
    %437 = vdwg.mxu0
    %v439 = vsel %vm390, %v387, 0
    %v442 = vsel %vm390, %v385, 0
    %444 = vmatprep.subr.bf16.mxu0 0
    %445 = vmatpush1.bf16.xpose.msra.mxu0 0
    %446 = vmatprep.subr.bf16.mxu0 0
    %447 = vmatpush1.bf16.xpose.msra.mxu0 0
    %448 = vmatprep.subr.bf16.mxu0 0
    %449 = vmatpush1.bf16.xpose.msra.mxu0 0
    %450 = vmatprep.subr.bf16.mxu0 0
    %451 = vmatpush1.bf16.xpose.msra.mxu0 0
    %452 = vmatprep.subr.bf16.mxu0 0
    %453 = vmatpush1.bf16.xpose.msra.mxu0 0
    %454 = vmatprep.subr.bf16.mxu0 0
    %455 = vmatpush1.bf16.xpose.msra.mxu0 0
    %456 = vmatprep.subr.bf16.mxu0 0
    %457 = vmatpush1.bf16.xpose.msra.mxu0 0
    %458 = vmatprep.subr.bf16.mxu0 0
    %459 = vmatpush1.bf16.xpose.msra.mxu0 %v442
    %460 = vmatprep.subr.bf16.mxu0 0
    %461 = vmatpush2.bf16.xpose.msra.mxu0 0
    %462 = vmatprep.subr.bf16.mxu0 0
    %463 = vmatpush2.bf16.xpose.msra.mxu0 0
    %464 = vmatprep.subr.bf16.mxu0 0
    %465 = vmatpush2.bf16.xpose.msra.mxu0 0
    %466 = vmatprep.subr.bf16.mxu0 0
    %467 = vmatpush2.bf16.xpose.msra.mxu0 0
    %468 = vmatprep.subr.bf16.mxu0 0
    %469 = vmatpush2.bf16.xpose.msra.mxu0 0
    %470 = vmatprep.subr.bf16.mxu0 0
    %471 = vmatpush2.bf16.xpose.msra.mxu0 0
    %472 = vmatprep.subr.bf16.mxu0 0
    %473 = vmatpush2.bf16.xpose.msra.mxu0 0
    %474 = vmatprep.subr.bf16.mxu0 0
    %475 = vmatpush2.bf16.xpose.msra.mxu0 0
    %476 = vmatprep.mubr.bf16.mxu0 0
    %477 = vmatmul.mubr.bf16.gmra.mxu0 %v439
    %v478 = vpop.f32.mrf.mxu0
    %v479 = vadd.f32 0.0, %v478
    %v480 = vpop.f32.mrf.mxu0
    %v481 = vpop.f32.mrf.mxu0
    %v482 = vadd.f32 0.0, %v481
    %v483 = vpop.f32.mrf.mxu0
    %484 = vdwg.mxu0
    %vm485 = vcmask 130048
    %v486 = vsel %vm485, %v432, -inf
    %487 = vmax.xlane.f32.xlu0 %v486
    %v488 = vpop.xlane.xlu0 %487
    %v489 = vsel %vm485, %v435, -inf
    %490 = vmax.xlane.f32.xlu0 %v489
    %v491 = vpop.xlane.xlu0 %490
    %v492 = vsel %vm485, %v479, -inf
    %493 = vmax.xlane.f32.xlu0 %v492
    %v494 = vpop.xlane.xlu0 %493
    %v495 = vsel %vm485, %v482, -inf
    %496 = vmax.xlane.f32.xlu0 %v495
    %v497 = vpop.xlane.xlu0 %496
    %v498 = vsub.f32 %v432, %v488
    %v499 = vsub.f32 %v435, %v491
    %v500 = vsub.f32 %v479, %v494
    %v501 = vsub.f32 %v482, %v497
    %v502 = vmul.f32 %v498, 1.442695
    %v503 = vpow.pop %v502
    %v504 = vmul.f32 %v499, 1.442695
    %v505 = vpow.pop %v504
    %v506 = vmul.f32 %v500, 1.442695
    %v507 = vpow.pop %v506
    %v508 = vmul.f32 %v501, 1.442695
    %v509 = vpow.pop %v508
    %v510 = vsel %vm485, %v503, 0.0
    %511 = vadd.xlane.f32.xlu0 %v510
    %v512 = vpop.xlane.xlu0 %511
    %v513 = vsel %vm485, %v505, 0.0
    %514 = vadd.xlane.f32.xlu0 %v513
    %v515 = vpop.xlane.xlu0 %514
    %v516 = vsel %vm485, %v507, 0.0
    %517 = vadd.xlane.f32.xlu0 %v516
    %v518 = vpop.xlane.xlu0 %517
    %v519 = vsel %vm485, %v509, 0.0
    %520 = vadd.xlane.f32.xlu0 %v519
    %v521 = vpop.xlane.xlu0 %520
    %v522 = vrcp.pop %v512
    %v523 = vrcp.pop %v515
    %v524 = vrcp.pop %v518
    %v525 = vrcp.pop %v521
    %v526 = vmul.f32 %v503, %v522
    %v527 = vmul.f32 %v505, %v523
    %v528 = vmul.f32 %v507, %v524
    %v529 = vmul.f32 %v509, %v525
    %v530 = vpack.c.bf16 %v527, %v526
    %v531 = vpack.c.bf16 %v529, %v528
    %v533 = vsel %vm485, %v530, 0
    %535 = vmatprep.subr.bf16.mxu0 0
    %536 = vmatpush1.bf16.msra.mxu0 0
    %537 = vmatprep.subr.bf16.mxu0 0
    %538 = vmatpush1.bf16.msra.mxu0 0
    %539 = vmatprep.subr.bf16.mxu0 0
    %540 = vmatpush1.bf16.msra.mxu0 0
    %541 = vmatprep.subr.bf16.mxu0 0
    %542 = vmatpush1.bf16.msra.mxu0 0
    %543 = vmatprep.subr.bf16.mxu0 0
    %544 = vmatpush1.bf16.msra.mxu0 0
    %545 = vmatprep.subr.bf16.mxu0 0
    %546 = vmatpush1.bf16.msra.mxu0 0
    %547 = vmatprep.subr.bf16.mxu0 0
    %548 = vmatpush1.bf16.msra.mxu0 0
    %549 = vmatprep.subr.bf16.mxu0 0
    %550 = vmatpush1.bf16.msra.mxu0 %v388
    %551 = vmatprep.subr.bf16.mxu0 0
    %552 = vmatpush2.bf16.msra.mxu0 0
    %553 = vmatprep.subr.bf16.mxu0 0
    %554 = vmatpush2.bf16.msra.mxu0 0
    %555 = vmatprep.subr.bf16.mxu0 0
    %556 = vmatpush2.bf16.msra.mxu0 0
    %557 = vmatprep.subr.bf16.mxu0 0
    %558 = vmatpush2.bf16.msra.mxu0 0
    %559 = vmatprep.subr.bf16.mxu0 0
    %560 = vmatpush2.bf16.msra.mxu0 0
    %561 = vmatprep.subr.bf16.mxu0 0
    %562 = vmatpush2.bf16.msra.mxu0 0
    %563 = vmatprep.subr.bf16.mxu0 0
    %564 = vmatpush2.bf16.msra.mxu0 0
    %565 = vmatprep.subr.bf16.mxu0 0
    %566 = vmatpush2.bf16.msra.mxu0 0
    %567 = vmatprep.mubr.bf16.mxu0 0
    %568 = vmatmul.mubr.bf16.gmra.mxu0 %v533
    %v569 = vpop.f32.mrf.mxu0
    %v570 = vadd.f32 0.0, %v569
    %v571 = vpop.f32.mrf.mxu0
    %v572 = vpop.f32.mrf.mxu0
    %v573 = vadd.f32 0.0, %v572
    %v574 = vpop.f32.mrf.mxu0
    %575 = vdwg.mxu0
    %v577 = vsel %vm485, %v531, 0
    %579 = vmatprep.subr.bf16.mxu0 0
    %580 = vmatpush1.bf16.msra.mxu0 0
    %581 = vmatprep.subr.bf16.mxu0 0
    %582 = vmatpush1.bf16.msra.mxu0 0
    %583 = vmatprep.subr.bf16.mxu0 0
    %584 = vmatpush1.bf16.msra.mxu0 0
    %585 = vmatprep.subr.bf16.mxu0 0
    %586 = vmatpush1.bf16.msra.mxu0 0
    %587 = vmatprep.subr.bf16.mxu0 0
    %588 = vmatpush1.bf16.msra.mxu0 0
    %589 = vmatprep.subr.bf16.mxu0 0
    %590 = vmatpush1.bf16.msra.mxu0 0
    %591 = vmatprep.subr.bf16.mxu0 0
    %592 = vmatpush1.bf16.msra.mxu0 0
    %593 = vmatprep.subr.bf16.mxu0 0
    %594 = vmatpush1.bf16.msra.mxu0 %v389
    %595 = vmatprep.subr.bf16.mxu0 0
    %596 = vmatpush2.bf16.msra.mxu0 0
    %597 = vmatprep.subr.bf16.mxu0 0
    %598 = vmatpush2.bf16.msra.mxu0 0
    %599 = vmatprep.subr.bf16.mxu0 0
    %600 = vmatpush2.bf16.msra.mxu0 0
    %601 = vmatprep.subr.bf16.mxu0 0
    %602 = vmatpush2.bf16.msra.mxu0 0
    %603 = vmatprep.subr.bf16.mxu0 0
    %604 = vmatpush2.bf16.msra.mxu0 0
    %605 = vmatprep.subr.bf16.mxu0 0
    %606 = vmatpush2.bf16.msra.mxu0 0
    %607 = vmatprep.subr.bf16.mxu0 0
    %608 = vmatpush2.bf16.msra.mxu0 0
    %609 = vmatprep.subr.bf16.mxu0 0
    %610 = vmatpush2.bf16.msra.mxu0 0
    %611 = vmatprep.mubr.bf16.mxu0 0
    %612 = vmatmul.mubr.bf16.gmra.mxu0 %v577
    %v613 = vpop.f32.mrf.mxu0
    %v614 = vadd.f32 0.0, %v613
    %v615 = vpop.f32.mrf.mxu0
    %v616 = vpop.f32.mrf.mxu0
    %v617 = vadd.f32 0.0, %v616
    %v618 = vpop.f32.mrf.mxu0
    %619 = vdwg.mxu0
    %v620 = vpack.c.bf16 %v573, %v570
    %v621 = vpack.c.bf16 %v617, %v614
    %v622 = vld [vmem:[%s4] sm:$0xf]
    %v623 = vld [vmem:[%s4 + $0x4] sm:$0xf]
    %v624 = vld [vmem:[%s4 + $0x8] sm:$0xf]
    %v625 = vld [vmem:[%s4 + $0xc] sm:$0xf]
    %s626 = scalar_lea.vmem %s1, 64
    %v627 = vld [vmem:[%s626] sm:$0xf]
    %v628 = vld [vmem:[%s626 + $0x4] sm:$0xf]
    %v629 = vld [vmem:[%s626 + $0x8] sm:$0xf]
    %v630 = vld [vmem:[%s626 + $0xc] sm:$0xf]
    %v631 = vld [vmem:[%s626 + $0x10] sm:$0xf]
    %v632 = vld [vmem:[%s626 + $0x14] sm:$0xf]
    %v633 = vld [vmem:[%s626 + $0x18] sm:$0xf]
    %v634 = vld [vmem:[%s626 + $0x1c] sm:$0xf]
    %v635 = vld [vmem:[%s626 + $0x20] sm:$0xf]
    %v636 = vld [vmem:[%s626 + $0x24] sm:$0xf]
    %v637 = vld [vmem:[%s626 + $0x28] sm:$0xf]
    %v638 = vld [vmem:[%s626 + $0x2c] sm:$0xf]
    %v639 = vld [vmem:[%s626 + $0x30] sm:$0xf]
    %v640 = vld [vmem:[%s626 + $0x34] sm:$0xf]
    %v641 = vld [vmem:[%s626 + $0x38] sm:$0xf]
    %v642 = vld [vmem:[%s626 + $0x3c] sm:$0xf]
    %v659 = vunpack.c.l.b16 %v627
    %v660 = vunpack.c.l.b16 %v628
    %v661 = vunpack.c.l.b16 %v629
    %v662 = vunpack.c.l.b16 %v630
    %v663 = vunpack.c.l.b16 %v631
    %v664 = vunpack.c.l.b16 %v632
    %v665 = vunpack.c.l.b16 %v633
    %v666 = vunpack.c.l.b16 %v634
    %v667 = vunpack.c.l.b16 %v635
    %v668 = vunpack.c.l.b16 %v636
    %v669 = vunpack.c.l.b16 %v637
    %v670 = vunpack.c.l.b16 %v638
    %v671 = vunpack.c.l.b16 %v639
    %v672 = vunpack.c.l.b16 %v640
    %v673 = vunpack.c.l.b16 %v641
    %v674 = vunpack.c.l.b16 %v642
    %v675 = vpack.c.b16 %v660, %v659
    %v676 = vpack.c.b16 %v662, %v661
    %v677 = vpack.c.b16 %v664, %v663
    %v678 = vpack.c.b16 %v666, %v665
    %v679 = vpack.c.b16 %v668, %v667
    %v680 = vpack.c.b16 %v670, %v669
    %v681 = vpack.c.b16 %v672, %v671
    %v682 = vpack.c.b16 %v674, %v673
    %691 = vmatprep.subr.bf16.mxu0 0
    %692 = vmatpush1.bf16.msra.mxu0 %v682
    %693 = vmatprep.subr.bf16.mxu0 0
    %694 = vmatpush1.bf16.msra.mxu0 %v681
    %695 = vmatprep.subr.bf16.mxu0 0
    %696 = vmatpush1.bf16.msra.mxu0 %v680
    %697 = vmatprep.subr.bf16.mxu0 0
    %698 = vmatpush1.bf16.msra.mxu0 %v679
    %699 = vmatprep.subr.bf16.mxu0 0
    %700 = vmatpush1.bf16.msra.mxu0 %v678
    %701 = vmatprep.subr.bf16.mxu0 0
    %702 = vmatpush1.bf16.msra.mxu0 %v677
    %703 = vmatprep.subr.bf16.mxu0 0
    %704 = vmatpush1.bf16.msra.mxu0 %v676
    %705 = vmatprep.subr.bf16.mxu0 0
    %706 = vmatpush1.bf16.msra.mxu0 %v675
    %707 = vmatprep.subr.bf16.mxu0 0
    %708 = vmatpush2.bf16.msra.mxu0 0
    %709 = vmatprep.subr.bf16.mxu0 0
    %710 = vmatpush2.bf16.msra.mxu0 0
    %711 = vmatprep.subr.bf16.mxu0 0
    %712 = vmatpush2.bf16.msra.mxu0 0
    %713 = vmatprep.subr.bf16.mxu0 0
    %714 = vmatpush2.bf16.msra.mxu0 0
    %715 = vmatprep.subr.bf16.mxu0 0
    %716 = vmatpush2.bf16.msra.mxu0 0
    %717 = vmatprep.subr.bf16.mxu0 0
    %718 = vmatpush2.bf16.msra.mxu0 0
    %719 = vmatprep.subr.bf16.mxu0 0
    %720 = vmatpush2.bf16.msra.mxu0 0
    %721 = vmatprep.subr.bf16.mxu0 0
    %722 = vmatpush2.bf16.msra.mxu0 0
    %723 = vmatprep.mubr.bf16.mxu0 0
    %724 = vmatmul.mubr.bf16.gmra.mxu0 %v53
    %v725 = vpop.f32.mrf.mxu0
    %v726 = vadd.f32 0.0, %v725
    %v727 = vpop.f32.mrf.mxu0
    %v728 = vpop.f32.mrf.mxu0
    %v729 = vadd.f32 0.0, %v728
    %v730 = vpop.f32.mrf.mxu0
    %731 = vmatprep.mubr.bf16.mxu0 0
    %732 = vmatmul.mubr.bf16.gmra.mxu0 %v54
    %v733 = vpop.f32.mrf.mxu0
    %v734 = vadd.f32 0.0, %v733
    %v735 = vpop.f32.mrf.mxu0
    %v736 = vpop.f32.mrf.mxu0
    %v737 = vadd.f32 0.0, %v736
    %v738 = vpop.f32.mrf.mxu0
    %739 = vdwg.mxu0
    %s740 = scalar_lea.vmem %s2, 64
    %v741 = vld [vmem:[%s740] sm:$0xf]
    %v742 = vld [vmem:[%s740 + $0x4] sm:$0xf]
    %v743 = vld [vmem:[%s740 + $0x8] sm:$0xf]
    %v744 = vld [vmem:[%s740 + $0xc] sm:$0xf]
    %v745 = vld [vmem:[%s740 + $0x10] sm:$0xf]
    %v746 = vld [vmem:[%s740 + $0x14] sm:$0xf]
    %v747 = vld [vmem:[%s740 + $0x18] sm:$0xf]
    %v748 = vld [vmem:[%s740 + $0x1c] sm:$0xf]
    %v749 = vld [vmem:[%s740 + $0x20] sm:$0xf]
    %v750 = vld [vmem:[%s740 + $0x24] sm:$0xf]
    %v751 = vld [vmem:[%s740 + $0x28] sm:$0xf]
    %v752 = vld [vmem:[%s740 + $0x2c] sm:$0xf]
    %v753 = vld [vmem:[%s740 + $0x30] sm:$0xf]
    %v754 = vld [vmem:[%s740 + $0x34] sm:$0xf]
    %v755 = vld [vmem:[%s740 + $0x38] sm:$0xf]
    %v756 = vld [vmem:[%s740 + $0x3c] sm:$0xf]
    %v773 = vunpack.c.l.b16 %v741
    %v774 = vunpack.c.l.b16 %v742
    %v775 = vunpack.c.l.b16 %v743
    %v776 = vunpack.c.l.b16 %v744
    %v777 = vunpack.c.l.b16 %v745
    %v778 = vunpack.c.l.b16 %v746
    %v779 = vunpack.c.l.b16 %v747
    %v780 = vunpack.c.l.b16 %v748
    %v781 = vunpack.c.l.b16 %v749
    %v782 = vunpack.c.l.b16 %v750
    %v783 = vunpack.c.l.b16 %v751
    %v784 = vunpack.c.l.b16 %v752
    %v785 = vunpack.c.l.b16 %v753
    %v786 = vunpack.c.l.b16 %v754
    %v787 = vunpack.c.l.b16 %v755
    %v788 = vunpack.c.l.b16 %v756
    %v789 = vpack.c.b16 %v774, %v773
    %v790 = vpack.c.b16 %v776, %v775
    %v791 = vpack.c.b16 %v778, %v777
    %v792 = vpack.c.b16 %v780, %v779
    %v793 = vpack.c.b16 %v782, %v781
    %v794 = vpack.c.b16 %v784, %v783
    %v795 = vpack.c.b16 %v786, %v785
    %v796 = vpack.c.b16 %v788, %v787
    %805 = vmatprep.subr.bf16.mxu0 0
    %806 = vmatpush1.bf16.msra.mxu0 %v796
    %807 = vmatprep.subr.bf16.mxu0 0
    %808 = vmatpush1.bf16.msra.mxu0 %v795
    %809 = vmatprep.subr.bf16.mxu0 0
    %810 = vmatpush1.bf16.msra.mxu0 %v794
    %811 = vmatprep.subr.bf16.mxu0 0
    %812 = vmatpush1.bf16.msra.mxu0 %v793
    %813 = vmatprep.subr.bf16.mxu0 0
    %814 = vmatpush1.bf16.msra.mxu0 %v792
    %815 = vmatprep.subr.bf16.mxu0 0
    %816 = vmatpush1.bf16.msra.mxu0 %v791
    %817 = vmatprep.subr.bf16.mxu0 0
    %818 = vmatpush1.bf16.msra.mxu0 %v790
    %819 = vmatprep.subr.bf16.mxu0 0
    %820 = vmatpush1.bf16.msra.mxu0 %v789
    %821 = vmatprep.subr.bf16.mxu0 0
    %822 = vmatpush2.bf16.msra.mxu0 0
    %823 = vmatprep.subr.bf16.mxu0 0
    %824 = vmatpush2.bf16.msra.mxu0 0
    %825 = vmatprep.subr.bf16.mxu0 0
    %826 = vmatpush2.bf16.msra.mxu0 0
    %827 = vmatprep.subr.bf16.mxu0 0
    %828 = vmatpush2.bf16.msra.mxu0 0
    %829 = vmatprep.subr.bf16.mxu0 0
    %830 = vmatpush2.bf16.msra.mxu0 0
    %831 = vmatprep.subr.bf16.mxu0 0
    %832 = vmatpush2.bf16.msra.mxu0 0
    %833 = vmatprep.subr.bf16.mxu0 0
    %834 = vmatpush2.bf16.msra.mxu0 0
    %835 = vmatprep.subr.bf16.mxu0 0
    %836 = vmatpush2.bf16.msra.mxu0 0
    %837 = vmatprep.mubr.bf16.mxu0 0
    %838 = vmatmul.mubr.bf16.gmra.mxu0 %v53
    %v839 = vpop.f32.mrf.mxu0
    %v840 = vadd.f32 0.0, %v839
    %v841 = vpop.f32.mrf.mxu0
    %v842 = vpop.f32.mrf.mxu0
    %v843 = vadd.f32 0.0, %v842
    %v844 = vpop.f32.mrf.mxu0
    %845 = vmatprep.mubr.bf16.mxu0 0
    %846 = vmatmul.mubr.bf16.gmra.mxu0 %v54
    %v847 = vpop.f32.mrf.mxu0
    %v848 = vadd.f32 0.0, %v847
    %v849 = vpop.f32.mrf.mxu0
    %v850 = vpop.f32.mrf.mxu0
    %v851 = vadd.f32 0.0, %v850
    %v852 = vpop.f32.mrf.mxu0
    %853 = vdwg.mxu0
    %v854 = vmul.f32 %v840, 0.088388346
    %v855 = vmul.f32 %v843, 0.088388346
    %v856 = vmul.f32 %v848, 0.088388346
    %v857 = vmul.f32 %v851, 0.088388346
    %s858 = scalar_lea.vmem %s3, 64
    %v859 = vld [vmem:[%s858] sm:$0xf]
    %v860 = vld [vmem:[%s858 + $0x4] sm:$0xf]
    %v861 = vld [vmem:[%s858 + $0x8] sm:$0xf]
    %v862 = vld [vmem:[%s858 + $0xc] sm:$0xf]
    %v863 = vld [vmem:[%s858 + $0x10] sm:$0xf]
    %v864 = vld [vmem:[%s858 + $0x14] sm:$0xf]
    %v865 = vld [vmem:[%s858 + $0x18] sm:$0xf]
    %v866 = vld [vmem:[%s858 + $0x1c] sm:$0xf]
    %v867 = vld [vmem:[%s858 + $0x20] sm:$0xf]
    %v868 = vld [vmem:[%s858 + $0x24] sm:$0xf]
    %v869 = vld [vmem:[%s858 + $0x28] sm:$0xf]
    %v870 = vld [vmem:[%s858 + $0x2c] sm:$0xf]
    %v871 = vld [vmem:[%s858 + $0x30] sm:$0xf]
    %v872 = vld [vmem:[%s858 + $0x34] sm:$0xf]
    %v873 = vld [vmem:[%s858 + $0x38] sm:$0xf]
    %v874 = vld [vmem:[%s858 + $0x3c] sm:$0xf]
    %v891 = vunpack.c.l.b16 %v859
    %v892 = vunpack.c.l.b16 %v860
    %v893 = vunpack.c.l.b16 %v861
    %v894 = vunpack.c.l.b16 %v862
    %v895 = vunpack.c.l.b16 %v863
    %v896 = vunpack.c.l.b16 %v864
    %v897 = vunpack.c.l.b16 %v865
    %v898 = vunpack.c.l.b16 %v866
    %v899 = vunpack.c.l.b16 %v867
    %v900 = vunpack.c.l.b16 %v868
    %v901 = vunpack.c.l.b16 %v869
    %v902 = vunpack.c.l.b16 %v870
    %v903 = vunpack.c.l.b16 %v871
    %v904 = vunpack.c.l.b16 %v872
    %v905 = vunpack.c.l.b16 %v873
    %v906 = vunpack.c.l.b16 %v874
    %v907 = vpack.c.b16 %v892, %v891
    %v908 = vpack.c.b16 %v894, %v893
    %v909 = vpack.c.b16 %v896, %v895
    %v910 = vpack.c.b16 %v898, %v897
    %v911 = vpack.c.b16 %v900, %v899
    %v912 = vpack.c.b16 %v902, %v901
    %v913 = vpack.c.b16 %v904, %v903
    %v914 = vpack.c.b16 %v906, %v905
    %923 = vmatprep.subr.bf16.mxu0 0
    %924 = vmatpush1.bf16.msra.mxu0 %v914
    %925 = vmatprep.subr.bf16.mxu0 0
    %926 = vmatpush1.bf16.msra.mxu0 %v913
    %927 = vmatprep.subr.bf16.mxu0 0
    %928 = vmatpush1.bf16.msra.mxu0 %v912
    %929 = vmatprep.subr.bf16.mxu0 0
    %930 = vmatpush1.bf16.msra.mxu0 %v911
    %931 = vmatprep.subr.bf16.mxu0 0
    %932 = vmatpush1.bf16.msra.mxu0 %v910
    %933 = vmatprep.subr.bf16.mxu0 0
    %934 = vmatpush1.bf16.msra.mxu0 %v909
    %935 = vmatprep.subr.bf16.mxu0 0
    %936 = vmatpush1.bf16.msra.mxu0 %v908
    %937 = vmatprep.subr.bf16.mxu0 0
    %938 = vmatpush1.bf16.msra.mxu0 %v907
    %939 = vmatprep.subr.bf16.mxu0 0
    %940 = vmatpush2.bf16.msra.mxu0 0
    %941 = vmatprep.subr.bf16.mxu0 0
    %942 = vmatpush2.bf16.msra.mxu0 0
    %943 = vmatprep.subr.bf16.mxu0 0
    %944 = vmatpush2.bf16.msra.mxu0 0
    %945 = vmatprep.subr.bf16.mxu0 0
    %946 = vmatpush2.bf16.msra.mxu0 0
    %947 = vmatprep.subr.bf16.mxu0 0
    %948 = vmatpush2.bf16.msra.mxu0 0
    %949 = vmatprep.subr.bf16.mxu0 0
    %950 = vmatpush2.bf16.msra.mxu0 0
    %951 = vmatprep.subr.bf16.mxu0 0
    %952 = vmatpush2.bf16.msra.mxu0 0
    %953 = vmatprep.subr.bf16.mxu0 0
    %954 = vmatpush2.bf16.msra.mxu0 0
    %955 = vmatprep.mubr.bf16.mxu0 0
    %956 = vmatmul.mubr.bf16.gmra.mxu0 %v53
    %v957 = vpop.f32.mrf.mxu0
    %v958 = vadd.f32 0.0, %v957
    %v959 = vpop.f32.mrf.mxu0
    %v960 = vpop.f32.mrf.mxu0
    %v961 = vadd.f32 0.0, %v960
    %v962 = vpop.f32.mrf.mxu0
    %963 = vmatprep.mubr.bf16.mxu0 0
    %964 = vmatmul.mubr.bf16.gmra.mxu0 %v54
    %v965 = vpop.f32.mrf.mxu0
    %v966 = vadd.f32 0.0, %v965
    %v967 = vpop.f32.mrf.mxu0
    %v968 = vpop.f32.mrf.mxu0
    %v969 = vadd.f32 0.0, %v968
    %v970 = vpop.f32.mrf.mxu0
    %971 = vdwg.mxu0
    %v972 = vpack.c.bf16 %v729, %v726
    %v973 = vpack.c.bf16 %v737, %v734
    %v974 = vpack.c.bf16 %v855, %v854
    %v975 = vpack.c.bf16 %v857, %v856
    %v976 = vpack.c.bf16 %v961, %v958
    %v977 = vpack.c.bf16 %v969, %v966
    %v979 = vsel %vm390, %v974, 0
    %v982 = vsel %vm390, %v972, 0
    %984 = vmatprep.subr.bf16.mxu0 0
    %985 = vmatpush1.bf16.xpose.msra.mxu0 0
    %986 = vmatprep.subr.bf16.mxu0 0
    %987 = vmatpush1.bf16.xpose.msra.mxu0 0
    %988 = vmatprep.subr.bf16.mxu0 0
    %989 = vmatpush1.bf16.xpose.msra.mxu0 0
    %990 = vmatprep.subr.bf16.mxu0 0
    %991 = vmatpush1.bf16.xpose.msra.mxu0 0
    %992 = vmatprep.subr.bf16.mxu0 0
    %993 = vmatpush1.bf16.xpose.msra.mxu0 0
    %994 = vmatprep.subr.bf16.mxu0 0
    %995 = vmatpush1.bf16.xpose.msra.mxu0 0
    %996 = vmatprep.subr.bf16.mxu0 0
    %997 = vmatpush1.bf16.xpose.msra.mxu0 0
    %998 = vmatprep.subr.bf16.mxu0 0
    %999 = vmatpush1.bf16.xpose.msra.mxu0 %v982
    %1000 = vmatprep.subr.bf16.mxu0 0
    %1001 = vmatpush2.bf16.xpose.msra.mxu0 0
    %1002 = vmatprep.subr.bf16.mxu0 0
    %1003 = vmatpush2.bf16.xpose.msra.mxu0 0
    %1004 = vmatprep.subr.bf16.mxu0 0
    %1005 = vmatpush2.bf16.xpose.msra.mxu0 0
    %1006 = vmatprep.subr.bf16.mxu0 0
    %1007 = vmatpush2.bf16.xpose.msra.mxu0 0
    %1008 = vmatprep.subr.bf16.mxu0 0
    %1009 = vmatpush2.bf16.xpose.msra.mxu0 0
    %1010 = vmatprep.subr.bf16.mxu0 0
    %1011 = vmatpush2.bf16.xpose.msra.mxu0 0
    %1012 = vmatprep.subr.bf16.mxu0 0
    %1013 = vmatpush2.bf16.xpose.msra.mxu0 0
    %1014 = vmatprep.subr.bf16.mxu0 0
    %1015 = vmatpush2.bf16.xpose.msra.mxu0 0
    %1016 = vmatprep.mubr.bf16.mxu0 0
    %1017 = vmatmul.mubr.bf16.gmra.mxu0 %v979
    %v1018 = vpop.f32.mrf.mxu0
    %v1019 = vadd.f32 0.0, %v1018
    %v1020 = vpop.f32.mrf.mxu0
    %v1021 = vpop.f32.mrf.mxu0
    %v1022 = vadd.f32 0.0, %v1021
    %v1023 = vpop.f32.mrf.mxu0
    %1024 = vdwg.mxu0
    %v1026 = vsel %vm390, %v975, 0
    %v1029 = vsel %vm390, %v973, 0
    %1031 = vmatprep.subr.bf16.mxu0 0
    %1032 = vmatpush1.bf16.xpose.msra.mxu0 0
    %1033 = vmatprep.subr.bf16.mxu0 0
    %1034 = vmatpush1.bf16.xpose.msra.mxu0 0
    %1035 = vmatprep.subr.bf16.mxu0 0
    %1036 = vmatpush1.bf16.xpose.msra.mxu0 0
    %1037 = vmatprep.subr.bf16.mxu0 0
    %1038 = vmatpush1.bf16.xpose.msra.mxu0 0
    %1039 = vmatprep.subr.bf16.mxu0 0
    %1040 = vmatpush1.bf16.xpose.msra.mxu0 0
    %1041 = vmatprep.subr.bf16.mxu0 0
    %1042 = vmatpush1.bf16.xpose.msra.mxu0 0
    %1043 = vmatprep.subr.bf16.mxu0 0
    %1044 = vmatpush1.bf16.xpose.msra.mxu0 0
    %1045 = vmatprep.subr.bf16.mxu0 0
    %1046 = vmatpush1.bf16.xpose.msra.mxu0 %v1029
    %1047 = vmatprep.subr.bf16.mxu0 0
    %1048 = vmatpush2.bf16.xpose.msra.mxu0 0
    %1049 = vmatprep.subr.bf16.mxu0 0
    %1050 = vmatpush2.bf16.xpose.msra.mxu0 0
    %1051 = vmatprep.subr.bf16.mxu0 0
    %1052 = vmatpush2.bf16.xpose.msra.mxu0 0
    %1053 = vmatprep.subr.bf16.mxu0 0
    %1054 = vmatpush2.bf16.xpose.msra.mxu0 0
    %1055 = vmatprep.subr.bf16.mxu0 0
    %1056 = vmatpush2.bf16.xpose.msra.mxu0 0
    %1057 = vmatprep.subr.bf16.mxu0 0
    %1058 = vmatpush2.bf16.xpose.msra.mxu0 0
    %1059 = vmatprep.subr.bf16.mxu0 0
    %1060 = vmatpush2.bf16.xpose.msra.mxu0 0
    %1061 = vmatprep.subr.bf16.mxu0 0
    %1062 = vmatpush2.bf16.xpose.msra.mxu0 0
    %1063 = vmatprep.mubr.bf16.mxu0 0
    %1064 = vmatmul.mubr.bf16.gmra.mxu0 %v1026
    %v1065 = vpop.f32.mrf.mxu0
    %v1066 = vadd.f32 0.0, %v1065
    %v1067 = vpop.f32.mrf.mxu0
    %v1068 = vpop.f32.mrf.mxu0
    %v1069 = vadd.f32 0.0, %v1068
    %v1070 = vpop.f32.mrf.mxu0
    %1071 = vdwg.mxu0
    %v1072 = vsel %vm485, %v1019, -inf
    %1073 = vmax.xlane.f32.xlu0 %v1072
    %v1074 = vpop.xlane.xlu0 %1073
    %v1075 = vsel %vm485, %v1022, -inf
    %1076 = vmax.xlane.f32.xlu0 %v1075
    %v1077 = vpop.xlane.xlu0 %1076
    %v1078 = vsel %vm485, %v1066, -inf
    %1079 = vmax.xlane.f32.xlu0 %v1078
    %v1080 = vpop.xlane.xlu0 %1079
    %v1081 = vsel %vm485, %v1069, -inf
    %1082 = vmax.xlane.f32.xlu0 %v1081
    %v1083 = vpop.xlane.xlu0 %1082
    %v1084 = vsub.f32 %v1019, %v1074
    %v1085 = vsub.f32 %v1022, %v1077
    %v1086 = vsub.f32 %v1066, %v1080
    %v1087 = vsub.f32 %v1069, %v1083
    %v1088 = vmul.f32 %v1084, 1.442695
    %v1089 = vpow.pop %v1088
    %v1090 = vmul.f32 %v1085, 1.442695
    %v1091 = vpow.pop %v1090
    %v1092 = vmul.f32 %v1086, 1.442695
    %v1093 = vpow.pop %v1092
    %v1094 = vmul.f32 %v1087, 1.442695
    %v1095 = vpow.pop %v1094
    %v1096 = vsel %vm485, %v1089, 0.0
    %1097 = vadd.xlane.f32.xlu0 %v1096
    %v1098 = vpop.xlane.xlu0 %1097
    %v1099 = vsel %vm485, %v1091, 0.0
    %1100 = vadd.xlane.f32.xlu0 %v1099
    %v1101 = vpop.xlane.xlu0 %1100
    %v1102 = vsel %vm485, %v1093, 0.0
    %1103 = vadd.xlane.f32.xlu0 %v1102
    %v1104 = vpop.xlane.xlu0 %1103
    %v1105 = vsel %vm485, %v1095, 0.0
    %1106 = vadd.xlane.f32.xlu0 %v1105
    %v1107 = vpop.xlane.xlu0 %1106
    %v1108 = vrcp.pop %v1098
    %v1109 = vrcp.pop %v1101
    %v1110 = vrcp.pop %v1104
    %v1111 = vrcp.pop %v1107
    %v1112 = vmul.f32 %v1089, %v1108
    %v1113 = vmul.f32 %v1091, %v1109
    %v1114 = vmul.f32 %v1093, %v1110
    %v1115 = vmul.f32 %v1095, %v1111
    %v1116 = vpack.c.bf16 %v1113, %v1112
    %v1117 = vpack.c.bf16 %v1115, %v1114
    %v1119 = vsel %vm485, %v1116, 0
    %1121 = vmatprep.subr.bf16.mxu0 0
    %1122 = vmatpush1.bf16.msra.mxu0 0
    %1123 = vmatprep.subr.bf16.mxu0 0
    %1124 = vmatpush1.bf16.msra.mxu0 0
    %1125 = vmatprep.subr.bf16.mxu0 0
    %1126 = vmatpush1.bf16.msra.mxu0 0
    %1127 = vmatprep.subr.bf16.mxu0 0
    %1128 = vmatpush1.bf16.msra.mxu0 0
    %1129 = vmatprep.subr.bf16.mxu0 0
    %1130 = vmatpush1.bf16.msra.mxu0 0
    %1131 = vmatprep.subr.bf16.mxu0 0
    %1132 = vmatpush1.bf16.msra.mxu0 0
    %1133 = vmatprep.subr.bf16.mxu0 0
    %1134 = vmatpush1.bf16.msra.mxu0 0
    %1135 = vmatprep.subr.bf16.mxu0 0
    %1136 = vmatpush1.bf16.msra.mxu0 %v976
    %1137 = vmatprep.subr.bf16.mxu0 0
    %1138 = vmatpush2.bf16.msra.mxu0 0
    %1139 = vmatprep.subr.bf16.mxu0 0
    %1140 = vmatpush2.bf16.msra.mxu0 0
    %1141 = vmatprep.subr.bf16.mxu0 0
    %1142 = vmatpush2.bf16.msra.mxu0 0
    %1143 = vmatprep.subr.bf16.mxu0 0
    %1144 = vmatpush2.bf16.msra.mxu0 0
    %1145 = vmatprep.subr.bf16.mxu0 0
    %1146 = vmatpush2.bf16.msra.mxu0 0
    %1147 = vmatprep.subr.bf16.mxu0 0
    %1148 = vmatpush2.bf16.msra.mxu0 0
    %1149 = vmatprep.subr.bf16.mxu0 0
    %1150 = vmatpush2.bf16.msra.mxu0 0
    %1151 = vmatprep.subr.bf16.mxu0 0
    %1152 = vmatpush2.bf16.msra.mxu0 0
    %1153 = vmatprep.mubr.bf16.mxu0 0
    %1154 = vmatmul.mubr.bf16.gmra.mxu0 %v1119
    %v1155 = vpop.f32.mrf.mxu0
    %v1156 = vadd.f32 0.0, %v1155
    %v1157 = vpop.f32.mrf.mxu0
    %v1158 = vpop.f32.mrf.mxu0
    %v1159 = vadd.f32 0.0, %v1158
    %v1160 = vpop.f32.mrf.mxu0
    %1161 = vdwg.mxu0
    %v1163 = vsel %vm485, %v1117, 0
    %1165 = vmatprep.subr.bf16.mxu0 0
    %1166 = vmatpush1.bf16.msra.mxu0 0
    %1167 = vmatprep.subr.bf16.mxu0 0
    %1168 = vmatpush1.bf16.msra.mxu0 0
    %1169 = vmatprep.subr.bf16.mxu0 0
    %1170 = vmatpush1.bf16.msra.mxu0 0
    %1171 = vmatprep.subr.bf16.mxu0 0
    %1172 = vmatpush1.bf16.msra.mxu0 0
    %1173 = vmatprep.subr.bf16.mxu0 0
    %1174 = vmatpush1.bf16.msra.mxu0 0
    %1175 = vmatprep.subr.bf16.mxu0 0
    %1176 = vmatpush1.bf16.msra.mxu0 0
    %1177 = vmatprep.subr.bf16.mxu0 0
    %1178 = vmatpush1.bf16.msra.mxu0 0
    %1179 = vmatprep.subr.bf16.mxu0 0
    %1180 = vmatpush1.bf16.msra.mxu0 %v977
    %1181 = vmatprep.subr.bf16.mxu0 0
    %1182 = vmatpush2.bf16.msra.mxu0 0
    %1183 = vmatprep.subr.bf16.mxu0 0
    %1184 = vmatpush2.bf16.msra.mxu0 0
    %1185 = vmatprep.subr.bf16.mxu0 0
    %1186 = vmatpush2.bf16.msra.mxu0 0
    %1187 = vmatprep.subr.bf16.mxu0 0
    %1188 = vmatpush2.bf16.msra.mxu0 0
    %1189 = vmatprep.subr.bf16.mxu0 0
    %1190 = vmatpush2.bf16.msra.mxu0 0
    %1191 = vmatprep.subr.bf16.mxu0 0
    %1192 = vmatpush2.bf16.msra.mxu0 0
    %1193 = vmatprep.subr.bf16.mxu0 0
    %1194 = vmatpush2.bf16.msra.mxu0 0
    %1195 = vmatprep.subr.bf16.mxu0 0
    %1196 = vmatpush2.bf16.msra.mxu0 0
    %1197 = vmatprep.mubr.bf16.mxu0 0
    %1198 = vmatmul.mubr.bf16.gmra.mxu0 %v1163
    %v1199 = vpop.f32.mrf.mxu0
    %v1200 = vadd.f32 0.0, %v1199
    %v1201 = vpop.f32.mrf.mxu0
    %v1202 = vpop.f32.mrf.mxu0
    %v1203 = vadd.f32 0.0, %v1202
    %v1204 = vpop.f32.mrf.mxu0
    %1205 = vdwg.mxu0
    %v1206 = vpack.c.bf16 %v1159, %v1156
    %v1207 = vpack.c.bf16 %v1203, %v1200
    %s1208 = scalar_lea.vmem %s4, 16
    %v1209 = vld [vmem:[%s1208] sm:$0xf]
    %v1210 = vld [vmem:[%s1208 + $0x4] sm:$0xf]
    %v1211 = vld [vmem:[%s1208 + $0x8] sm:$0xf]
    %v1212 = vld [vmem:[%s1208 + $0xc] sm:$0xf]
    %v1217 = vunpack.c.l.b16 %v1209
    %v1218 = vunpack.c.l.b16 %v1210
    %v1219 = vunpack.c.l.b16 %v1211
    %v1220 = vunpack.c.l.b16 %v1212
    %v1221 = vpack.c.b16 %v1218, %v1217
    %v1222 = vpack.c.b16 %v1220, %v1219
    %v1226 = vsel %vm390, %v1206, 0
    %v1229 = vsel %vm390, %v1207, 0
    %1231 = vmatprep.subr.bf16.mxu0 0
    %1232 = vmatpush1.bf16.msra.mxu0 0
    %1233 = vmatprep.subr.bf16.mxu0 0
    %1234 = vmatpush1.bf16.msra.mxu0 0
    %1235 = vmatprep.subr.bf16.mxu0 0
    %1236 = vmatpush1.bf16.msra.mxu0 0
    %1237 = vmatprep.subr.bf16.mxu0 0
    %1238 = vmatpush1.bf16.msra.mxu0 0
    %1239 = vmatprep.subr.bf16.mxu0 0
    %1240 = vmatpush1.bf16.msra.mxu0 0
    %1241 = vmatprep.subr.bf16.mxu0 0
    %1242 = vmatpush1.bf16.msra.mxu0 0
    %1243 = vmatprep.subr.bf16.mxu0 0
    %1244 = vmatpush1.bf16.msra.mxu0 %v1222
    %1245 = vmatprep.subr.bf16.mxu0 0
    %1246 = vmatpush1.bf16.msra.mxu0 %v1221
    %1247 = vmatprep.subr.bf16.mxu0 0
    %1248 = vmatpush2.bf16.msra.mxu0 0
    %1249 = vmatprep.subr.bf16.mxu0 0
    %1250 = vmatpush2.bf16.msra.mxu0 0
    %1251 = vmatprep.subr.bf16.mxu0 0
    %1252 = vmatpush2.bf16.msra.mxu0 0
    %1253 = vmatprep.subr.bf16.mxu0 0
    %1254 = vmatpush2.bf16.msra.mxu0 0
    %1255 = vmatprep.subr.bf16.mxu0 0
    %1256 = vmatpush2.bf16.msra.mxu0 0
    %1257 = vmatprep.subr.bf16.mxu0 0
    %1258 = vmatpush2.bf16.msra.mxu0 0
    %1259 = vmatprep.subr.bf16.mxu0 0
    %1260 = vmatpush2.bf16.msra.mxu0 0
    %1261 = vmatprep.subr.bf16.mxu0 0
    %1262 = vmatpush2.bf16.msra.mxu0 0
    %1263 = vmatprep.mubr.bf16.mxu0 0
    %1264 = vmatmul.mubr.bf16.gmra.mxu0 %v1226
    %v1265 = vpop.f32.mrf.mxu0
    %v1266 = vadd.f32 0.0, %v1265
    %v1267 = vpop.f32.mrf.mxu0
    %v1268 = vpop.f32.mrf.mxu0
    %v1269 = vadd.f32 0.0, %v1268
    %v1270 = vpop.f32.mrf.mxu0
    %1271 = vmatprep.mubr.bf16.mxu0 0
    %1272 = vmatmul.mubr.bf16.gmra.mxu0 %v1229
    %v1273 = vpop.f32.mrf.mxu0
    %v1274 = vadd.f32 0.0, %v1273
    %v1275 = vpop.f32.mrf.mxu0
    %v1276 = vpop.f32.mrf.mxu0
    %v1277 = vadd.f32 0.0, %v1276
    %v1278 = vpop.f32.mrf.mxu0
    %1279 = vdwg.mxu0
    %v1284 = vunpack.c.l.b16 %v622
    %v1285 = vunpack.c.l.b16 %v623
    %v1286 = vunpack.c.l.b16 %v624
    %v1287 = vunpack.c.l.b16 %v625
    %v1288 = vpack.c.b16 %v1285, %v1284
    %v1289 = vpack.c.b16 %v1287, %v1286
    %v1293 = vsel %vm390, %v620, 0
    %v1296 = vsel %vm390, %v621, 0
    %1298 = vmatprep.subr.bf16.mxu0 0
    %1299 = vmatpush1.bf16.msra.mxu0 0
    %1300 = vmatprep.subr.bf16.mxu0 0
    %1301 = vmatpush1.bf16.msra.mxu0 0
    %1302 = vmatprep.subr.bf16.mxu0 0
    %1303 = vmatpush1.bf16.msra.mxu0 0
    %1304 = vmatprep.subr.bf16.mxu0 0
    %1305 = vmatpush1.bf16.msra.mxu0 0
    %1306 = vmatprep.subr.bf16.mxu0 0
    %1307 = vmatpush1.bf16.msra.mxu0 0
    %1308 = vmatprep.subr.bf16.mxu0 0
    %1309 = vmatpush1.bf16.msra.mxu0 0
    %1310 = vmatprep.subr.bf16.mxu0 0
    %1311 = vmatpush1.bf16.msra.mxu0 %v1289
    %1312 = vmatprep.subr.bf16.mxu0 0
    %1313 = vmatpush1.bf16.msra.mxu0 %v1288
    %1314 = vmatprep.subr.bf16.mxu0 0
    %1315 = vmatpush2.bf16.msra.mxu0 0
    %1316 = vmatprep.subr.bf16.mxu0 0
    %1317 = vmatpush2.bf16.msra.mxu0 0
    %1318 = vmatprep.subr.bf16.mxu0 0
    %1319 = vmatpush2.bf16.msra.mxu0 0
    %1320 = vmatprep.subr.bf16.mxu0 0
    %1321 = vmatpush2.bf16.msra.mxu0 0
    %1322 = vmatprep.subr.bf16.mxu0 0
    %1323 = vmatpush2.bf16.msra.mxu0 0
    %1324 = vmatprep.subr.bf16.mxu0 0
    %1325 = vmatpush2.bf16.msra.mxu0 0
    %1326 = vmatprep.subr.bf16.mxu0 0
    %1327 = vmatpush2.bf16.msra.mxu0 0
    %1328 = vmatprep.subr.bf16.mxu0 0
    %1329 = vmatpush2.bf16.msra.mxu0 0
    %1330 = vmatprep.mubr.bf16.mxu0 0
    %1331 = vmatmul.mubr.bf16.gmra.mxu0 %v1293
    %v1332 = vpop.f32.mrf.mxu0
    %v1333 = vadd.f32 %v1266, %v1332
    %v1334 = vpop.f32.mrf.mxu0
    %v1335 = vpop.f32.mrf.mxu0
    %v1336 = vadd.f32 %v1269, %v1335
    %v1337 = vpop.f32.mrf.mxu0
    %1338 = vmatprep.mubr.bf16.mxu0 0
    %1339 = vmatmul.mubr.bf16.gmra.mxu0 %v1296
    %v1340 = vpop.f32.mrf.mxu0
    %v1341 = vadd.f32 %v1274, %v1340
    %v1342 = vpop.f32.mrf.mxu0
    %v1343 = vpop.f32.mrf.mxu0
    %v1344 = vadd.f32 %v1277, %v1343
    %v1345 = vpop.f32.mrf.mxu0
    %1346 = vdwg.mxu0
    %s1347 = scalar_lea.vmem %s1, 128
    %v1348 = vld [vmem:[%s1347] sm:$0xf]
    %v1349 = vld [vmem:[%s1347 + $0x4] sm:$0xf]
    %v1350 = vld [vmem:[%s1347 + $0x8] sm:$0xf]
    %v1351 = vld [vmem:[%s1347 + $0xc] sm:$0xf]
    %v1352 = vld [vmem:[%s1347 + $0x10] sm:$0xf]
    %v1353 = vld [vmem:[%s1347 + $0x14] sm:$0xf]
    %v1354 = vld [vmem:[%s1347 + $0x18] sm:$0xf]
    %v1355 = vld [vmem:[%s1347 + $0x1c] sm:$0xf]
    %v1356 = vld [vmem:[%s1347 + $0x20] sm:$0xf]
    %v1357 = vld [vmem:[%s1347 + $0x24] sm:$0xf]
    %v1358 = vld [vmem:[%s1347 + $0x28] sm:$0xf]
    %v1359 = vld [vmem:[%s1347 + $0x2c] sm:$0xf]
    %v1360 = vld [vmem:[%s1347 + $0x30] sm:$0xf]
    %v1361 = vld [vmem:[%s1347 + $0x34] sm:$0xf]
    %v1362 = vld [vmem:[%s1347 + $0x38] sm:$0xf]
    %v1363 = vld [vmem:[%s1347 + $0x3c] sm:$0xf]
    %v1380 = vunpack.c.l.b16 %v1348
    %v1381 = vunpack.c.l.b16 %v1349
    %v1382 = vunpack.c.l.b16 %v1350
    %v1383 = vunpack.c.l.b16 %v1351
    %v1384 = vunpack.c.l.b16 %v1352
    %v1385 = vunpack.c.l.b16 %v1353
    %v1386 = vunpack.c.l.b16 %v1354
    %v1387 = vunpack.c.l.b16 %v1355
    %v1388 = vunpack.c.l.b16 %v1356
    %v1389 = vunpack.c.l.b16 %v1357
    %v1390 = vunpack.c.l.b16 %v1358
    %v1391 = vunpack.c.l.b16 %v1359
    %v1392 = vunpack.c.l.b16 %v1360
    %v1393 = vunpack.c.l.b16 %v1361
    %v1394 = vunpack.c.l.b16 %v1362
    %v1395 = vunpack.c.l.b16 %v1363
    %v1396 = vpack.c.b16 %v1381, %v1380
    %v1397 = vpack.c.b16 %v1383, %v1382
    %v1398 = vpack.c.b16 %v1385, %v1384
    %v1399 = vpack.c.b16 %v1387, %v1386
    %v1400 = vpack.c.b16 %v1389, %v1388
    %v1401 = vpack.c.b16 %v1391, %v1390
    %v1402 = vpack.c.b16 %v1393, %v1392
    %v1403 = vpack.c.b16 %v1395, %v1394
    %1412 = vmatprep.subr.bf16.mxu0 0
    %1413 = vmatpush1.bf16.msra.mxu0 %v1403
    %1414 = vmatprep.subr.bf16.mxu0 0
    %1415 = vmatpush1.bf16.msra.mxu0 %v1402
    %1416 = vmatprep.subr.bf16.mxu0 0
    %1417 = vmatpush1.bf16.msra.mxu0 %v1401
    %1418 = vmatprep.subr.bf16.mxu0 0
    %1419 = vmatpush1.bf16.msra.mxu0 %v1400
    %1420 = vmatprep.subr.bf16.mxu0 0
    %1421 = vmatpush1.bf16.msra.mxu0 %v1399
    %1422 = vmatprep.subr.bf16.mxu0 0
    %1423 = vmatpush1.bf16.msra.mxu0 %v1398
    %1424 = vmatprep.subr.bf16.mxu0 0
    %1425 = vmatpush1.bf16.msra.mxu0 %v1397
    %1426 = vmatprep.subr.bf16.mxu0 0
    %1427 = vmatpush1.bf16.msra.mxu0 %v1396
    %1428 = vmatprep.subr.bf16.mxu0 0
    %1429 = vmatpush2.bf16.msra.mxu0 0
    %1430 = vmatprep.subr.bf16.mxu0 0
    %1431 = vmatpush2.bf16.msra.mxu0 0
    %1432 = vmatprep.subr.bf16.mxu0 0
    %1433 = vmatpush2.bf16.msra.mxu0 0
    %1434 = vmatprep.subr.bf16.mxu0 0
    %1435 = vmatpush2.bf16.msra.mxu0 0
    %1436 = vmatprep.subr.bf16.mxu0 0
    %1437 = vmatpush2.bf16.msra.mxu0 0
    %1438 = vmatprep.subr.bf16.mxu0 0
    %1439 = vmatpush2.bf16.msra.mxu0 0
    %1440 = vmatprep.subr.bf16.mxu0 0
    %1441 = vmatpush2.bf16.msra.mxu0 0
    %1442 = vmatprep.subr.bf16.mxu0 0
    %1443 = vmatpush2.bf16.msra.mxu0 0
    %1444 = vmatprep.mubr.bf16.mxu0 0
    %1445 = vmatmul.mubr.bf16.gmra.mxu0 %v53
    %v1446 = vpop.f32.mrf.mxu0
    %v1447 = vadd.f32 0.0, %v1446
    %v1448 = vpop.f32.mrf.mxu0
    %v1449 = vpop.f32.mrf.mxu0
    %v1450 = vadd.f32 0.0, %v1449
    %v1451 = vpop.f32.mrf.mxu0
    %1452 = vmatprep.mubr.bf16.mxu0 0
    %1453 = vmatmul.mubr.bf16.gmra.mxu0 %v54
    %v1454 = vpop.f32.mrf.mxu0
    %v1455 = vadd.f32 0.0, %v1454
    %v1456 = vpop.f32.mrf.mxu0
    %v1457 = vpop.f32.mrf.mxu0
    %v1458 = vadd.f32 0.0, %v1457
    %v1459 = vpop.f32.mrf.mxu0
    %1460 = vdwg.mxu0
    %s1461 = scalar_lea.vmem %s2, 128
    %v1462 = vld [vmem:[%s1461] sm:$0xf]
    %v1463 = vld [vmem:[%s1461 + $0x4] sm:$0xf]
    %v1464 = vld [vmem:[%s1461 + $0x8] sm:$0xf]
    %v1465 = vld [vmem:[%s1461 + $0xc] sm:$0xf]
    %v1466 = vld [vmem:[%s1461 + $0x10] sm:$0xf]
    %v1467 = vld [vmem:[%s1461 + $0x14] sm:$0xf]
    %v1468 = vld [vmem:[%s1461 + $0x18] sm:$0xf]
    %v1469 = vld [vmem:[%s1461 + $0x1c] sm:$0xf]
    %v1470 = vld [vmem:[%s1461 + $0x20] sm:$0xf]
    %v1471 = vld [vmem:[%s1461 + $0x24] sm:$0xf]
    %v1472 = vld [vmem:[%s1461 + $0x28] sm:$0xf]
    %v1473 = vld [vmem:[%s1461 + $0x2c] sm:$0xf]
    %v1474 = vld [vmem:[%s1461 + $0x30] sm:$0xf]
    %v1475 = vld [vmem:[%s1461 + $0x34] sm:$0xf]
    %v1476 = vld [vmem:[%s1461 + $0x38] sm:$0xf]
    %v1477 = vld [vmem:[%s1461 + $0x3c] sm:$0xf]
    %v1494 = vunpack.c.l.b16 %v1462
    %v1495 = vunpack.c.l.b16 %v1463
    %v1496 = vunpack.c.l.b16 %v1464
    %v1497 = vunpack.c.l.b16 %v1465
    %v1498 = vunpack.c.l.b16 %v1466
    %v1499 = vunpack.c.l.b16 %v1467
    %v1500 = vunpack.c.l.b16 %v1468
    %v1501 = vunpack.c.l.b16 %v1469
    %v1502 = vunpack.c.l.b16 %v1470
    %v1503 = vunpack.c.l.b16 %v1471
    %v1504 = vunpack.c.l.b16 %v1472
    %v1505 = vunpack.c.l.b16 %v1473
    %v1506 = vunpack.c.l.b16 %v1474
    %v1507 = vunpack.c.l.b16 %v1475
    %v1508 = vunpack.c.l.b16 %v1476
    %v1509 = vunpack.c.l.b16 %v1477
    %v1510 = vpack.c.b16 %v1495, %v1494
    %v1511 = vpack.c.b16 %v1497, %v1496
    %v1512 = vpack.c.b16 %v1499, %v1498
    %v1513 = vpack.c.b16 %v1501, %v1500
    %v1514 = vpack.c.b16 %v1503, %v1502
    %v1515 = vpack.c.b16 %v1505, %v1504
    %v1516 = vpack.c.b16 %v1507, %v1506
    %v1517 = vpack.c.b16 %v1509, %v1508
    %1526 = vmatprep.subr.bf16.mxu0 0
    %1527 = vmatpush1.bf16.msra.mxu0 %v1517
    %1528 = vmatprep.subr.bf16.mxu0 0
    %1529 = vmatpush1.bf16.msra.mxu0 %v1516
    %1530 = vmatprep.subr.bf16.mxu0 0
    %1531 = vmatpush1.bf16.msra.mxu0 %v1515
    %1532 = vmatprep.subr.bf16.mxu0 0
    %1533 = vmatpush1.bf16.msra.mxu0 %v1514
    %1534 = vmatprep.subr.bf16.mxu0 0
    %1535 = vmatpush1.bf16.msra.mxu0 %v1513
    %1536 = vmatprep.subr.bf16.mxu0 0
    %1537 = vmatpush1.bf16.msra.mxu0 %v1512
    %1538 = vmatprep.subr.bf16.mxu0 0
    %1539 = vmatpush1.bf16.msra.mxu0 %v1511
    %1540 = vmatprep.subr.bf16.mxu0 0
    %1541 = vmatpush1.bf16.msra.mxu0 %v1510
    %1542 = vmatprep.subr.bf16.mxu0 0
    %1543 = vmatpush2.bf16.msra.mxu0 0
    %1544 = vmatprep.subr.bf16.mxu0 0
    %1545 = vmatpush2.bf16.msra.mxu0 0
    %1546 = vmatprep.subr.bf16.mxu0 0
    %1547 = vmatpush2.bf16.msra.mxu0 0
    %1548 = vmatprep.subr.bf16.mxu0 0
    %1549 = vmatpush2.bf16.msra.mxu0 0
    %1550 = vmatprep.subr.bf16.mxu0 0
    %1551 = vmatpush2.bf16.msra.mxu0 0
    %1552 = vmatprep.subr.bf16.mxu0 0
    %1553 = vmatpush2.bf16.msra.mxu0 0
    %1554 = vmatprep.subr.bf16.mxu0 0
    %1555 = vmatpush2.bf16.msra.mxu0 0
    %1556 = vmatprep.subr.bf16.mxu0 0
    %1557 = vmatpush2.bf16.msra.mxu0 0
    %1558 = vmatprep.mubr.bf16.mxu0 0
    %1559 = vmatmul.mubr.bf16.gmra.mxu0 %v53
    %v1560 = vpop.f32.mrf.mxu0
    %v1561 = vadd.f32 0.0, %v1560
    %v1562 = vpop.f32.mrf.mxu0
    %v1563 = vpop.f32.mrf.mxu0
    %v1564 = vadd.f32 0.0, %v1563
    %v1565 = vpop.f32.mrf.mxu0
    %1566 = vmatprep.mubr.bf16.mxu0 0
    %1567 = vmatmul.mubr.bf16.gmra.mxu0 %v54
    %v1568 = vpop.f32.mrf.mxu0
    %v1569 = vadd.f32 0.0, %v1568
    %v1570 = vpop.f32.mrf.mxu0
    %v1571 = vpop.f32.mrf.mxu0
    %v1572 = vadd.f32 0.0, %v1571
    %v1573 = vpop.f32.mrf.mxu0
    %1574 = vdwg.mxu0
    %v1575 = vmul.f32 %v1561, 0.088388346
    %v1576 = vmul.f32 %v1564, 0.088388346
    %v1577 = vmul.f32 %v1569, 0.088388346
    %v1578 = vmul.f32 %v1572, 0.088388346
    %s1579 = scalar_lea.vmem %s3, 128
    %v1580 = vld [vmem:[%s1579] sm:$0xf]
    %v1581 = vld [vmem:[%s1579 + $0x4] sm:$0xf]
    %v1582 = vld [vmem:[%s1579 + $0x8] sm:$0xf]
    %v1583 = vld [vmem:[%s1579 + $0xc] sm:$0xf]
    %v1584 = vld [vmem:[%s1579 + $0x10] sm:$0xf]
    %v1585 = vld [vmem:[%s1579 + $0x14] sm:$0xf]
    %v1586 = vld [vmem:[%s1579 + $0x18] sm:$0xf]
    %v1587 = vld [vmem:[%s1579 + $0x1c] sm:$0xf]
    %v1588 = vld [vmem:[%s1579 + $0x20] sm:$0xf]
    %v1589 = vld [vmem:[%s1579 + $0x24] sm:$0xf]
    %v1590 = vld [vmem:[%s1579 + $0x28] sm:$0xf]
    %v1591 = vld [vmem:[%s1579 + $0x2c] sm:$0xf]
    %v1592 = vld [vmem:[%s1579 + $0x30] sm:$0xf]
    %v1593 = vld [vmem:[%s1579 + $0x34] sm:$0xf]
    %v1594 = vld [vmem:[%s1579 + $0x38] sm:$0xf]
    %v1595 = vld [vmem:[%s1579 + $0x3c] sm:$0xf]
    %v1612 = vunpack.c.l.b16 %v1580
    %v1613 = vunpack.c.l.b16 %v1581
    %v1614 = vunpack.c.l.b16 %v1582
    %v1615 = vunpack.c.l.b16 %v1583
    %v1616 = vunpack.c.l.b16 %v1584
    %v1617 = vunpack.c.l.b16 %v1585
    %v1618 = vunpack.c.l.b16 %v1586
    %v1619 = vunpack.c.l.b16 %v1587
    %v1620 = vunpack.c.l.b16 %v1588
    %v1621 = vunpack.c.l.b16 %v1589
    %v1622 = vunpack.c.l.b16 %v1590
    %v1623 = vunpack.c.l.b16 %v1591
    %v1624 = vunpack.c.l.b16 %v1592
    %v1625 = vunpack.c.l.b16 %v1593
    %v1626 = vunpack.c.l.b16 %v1594
    %v1627 = vunpack.c.l.b16 %v1595
    %v1628 = vpack.c.b16 %v1613, %v1612
    %v1629 = vpack.c.b16 %v1615, %v1614
    %v1630 = vpack.c.b16 %v1617, %v1616
    %v1631 = vpack.c.b16 %v1619, %v1618
    %v1632 = vpack.c.b16 %v1621, %v1620
    %v1633 = vpack.c.b16 %v1623, %v1622
    %v1634 = vpack.c.b16 %v1625, %v1624
    %v1635 = vpack.c.b16 %v1627, %v1626
    %1644 = vmatprep.subr.bf16.mxu0 0
    %1645 = vmatpush1.bf16.msra.mxu0 %v1635
    %1646 = vmatprep.subr.bf16.mxu0 0
    %1647 = vmatpush1.bf16.msra.mxu0 %v1634
    %1648 = vmatprep.subr.bf16.mxu0 0
    %1649 = vmatpush1.bf16.msra.mxu0 %v1633
    %1650 = vmatprep.subr.bf16.mxu0 0
    %1651 = vmatpush1.bf16.msra.mxu0 %v1632
    %1652 = vmatprep.subr.bf16.mxu0 0
    %1653 = vmatpush1.bf16.msra.mxu0 %v1631
    %1654 = vmatprep.subr.bf16.mxu0 0
    %1655 = vmatpush1.bf16.msra.mxu0 %v1630
    %1656 = vmatprep.subr.bf16.mxu0 0
    %1657 = vmatpush1.bf16.msra.mxu0 %v1629
    %1658 = vmatprep.subr.bf16.mxu0 0
    %1659 = vmatpush1.bf16.msra.mxu0 %v1628
    %1660 = vmatprep.subr.bf16.mxu0 0
    %1661 = vmatpush2.bf16.msra.mxu0 0
    %1662 = vmatprep.subr.bf16.mxu0 0
    %1663 = vmatpush2.bf16.msra.mxu0 0
    %1664 = vmatprep.subr.bf16.mxu0 0
    %1665 = vmatpush2.bf16.msra.mxu0 0
    %1666 = vmatprep.subr.bf16.mxu0 0
    %1667 = vmatpush2.bf16.msra.mxu0 0
    %1668 = vmatprep.subr.bf16.mxu0 0
    %1669 = vmatpush2.bf16.msra.mxu0 0
    %1670 = vmatprep.subr.bf16.mxu0 0
    %1671 = vmatpush2.bf16.msra.mxu0 0
    %1672 = vmatprep.subr.bf16.mxu0 0
    %1673 = vmatpush2.bf16.msra.mxu0 0
    %1674 = vmatprep.subr.bf16.mxu0 0
    %1675 = vmatpush2.bf16.msra.mxu0 0
    %1676 = vmatprep.mubr.bf16.mxu0 0
    %1677 = vmatmul.mubr.bf16.gmra.mxu0 %v53
    %v1678 = vpop.f32.mrf.mxu0
    %v1679 = vadd.f32 0.0, %v1678
    %v1680 = vpop.f32.mrf.mxu0
    %v1681 = vpop.f32.mrf.mxu0
    %v1682 = vadd.f32 0.0, %v1681
    %v1683 = vpop.f32.mrf.mxu0
    %1684 = vmatprep.mubr.bf16.mxu0 0
    %1685 = vmatmul.mubr.bf16.gmra.mxu0 %v54
    %v1686 = vpop.f32.mrf.mxu0
    %v1687 = vadd.f32 0.0, %v1686
    %v1688 = vpop.f32.mrf.mxu0
    %v1689 = vpop.f32.mrf.mxu0
    %v1690 = vadd.f32 0.0, %v1689
    %v1691 = vpop.f32.mrf.mxu0
    %1692 = vdwg.mxu0
    %v1693 = vpack.c.bf16 %v1450, %v1447
    %v1694 = vpack.c.bf16 %v1458, %v1455
    %v1695 = vpack.c.bf16 %v1576, %v1575
    %v1696 = vpack.c.bf16 %v1578, %v1577
    %v1697 = vpack.c.bf16 %v1682, %v1679
    %v1698 = vpack.c.bf16 %v1690, %v1687
    %v1700 = vsel %vm390, %v1695, 0
    %v1703 = vsel %vm390, %v1693, 0
    %1705 = vmatprep.subr.bf16.mxu0 0
    %1706 = vmatpush1.bf16.xpose.msra.mxu0 0
    %1707 = vmatprep.subr.bf16.mxu0 0
    %1708 = vmatpush1.bf16.xpose.msra.mxu0 0
    %1709 = vmatprep.subr.bf16.mxu0 0
    %1710 = vmatpush1.bf16.xpose.msra.mxu0 0
    %1711 = vmatprep.subr.bf16.mxu0 0
    %1712 = vmatpush1.bf16.xpose.msra.mxu0 0
    %1713 = vmatprep.subr.bf16.mxu0 0
    %1714 = vmatpush1.bf16.xpose.msra.mxu0 0
    %1715 = vmatprep.subr.bf16.mxu0 0
    %1716 = vmatpush1.bf16.xpose.msra.mxu0 0
    %1717 = vmatprep.subr.bf16.mxu0 0
    %1718 = vmatpush1.bf16.xpose.msra.mxu0 0
    %1719 = vmatprep.subr.bf16.mxu0 0
    %1720 = vmatpush1.bf16.xpose.msra.mxu0 %v1703
    %1721 = vmatprep.subr.bf16.mxu0 0
    %1722 = vmatpush2.bf16.xpose.msra.mxu0 0
    %1723 = vmatprep.subr.bf16.mxu0 0
    %1724 = vmatpush2.bf16.xpose.msra.mxu0 0
    %1725 = vmatprep.subr.bf16.mxu0 0
    %1726 = vmatpush2.bf16.xpose.msra.mxu0 0
    %1727 = vmatprep.subr.bf16.mxu0 0
    %1728 = vmatpush2.bf16.xpose.msra.mxu0 0
    %1729 = vmatprep.subr.bf16.mxu0 0
    %1730 = vmatpush2.bf16.xpose.msra.mxu0 0
    %1731 = vmatprep.subr.bf16.mxu0 0
    %1732 = vmatpush2.bf16.xpose.msra.mxu0 0
    %1733 = vmatprep.subr.bf16.mxu0 0
    %1734 = vmatpush2.bf16.xpose.msra.mxu0 0
    %1735 = vmatprep.subr.bf16.mxu0 0
    %1736 = vmatpush2.bf16.xpose.msra.mxu0 0
    %1737 = vmatprep.mubr.bf16.mxu0 0
    %1738 = vmatmul.mubr.bf16.gmra.mxu0 %v1700
    %v1739 = vpop.f32.mrf.mxu0
    %v1740 = vadd.f32 0.0, %v1739
    %v1741 = vpop.f32.mrf.mxu0
    %v1742 = vpop.f32.mrf.mxu0
    %v1743 = vadd.f32 0.0, %v1742
    %v1744 = vpop.f32.mrf.mxu0
    %1745 = vdwg.mxu0
    %v1747 = vsel %vm390, %v1696, 0
    %v1750 = vsel %vm390, %v1694, 0
    %1752 = vmatprep.subr.bf16.mxu0 0
    %1753 = vmatpush1.bf16.xpose.msra.mxu0 0
    %1754 = vmatprep.subr.bf16.mxu0 0
    %1755 = vmatpush1.bf16.xpose.msra.mxu0 0
    %1756 = vmatprep.subr.bf16.mxu0 0
    %1757 = vmatpush1.bf16.xpose.msra.mxu0 0
    %1758 = vmatprep.subr.bf16.mxu0 0
    %1759 = vmatpush1.bf16.xpose.msra.mxu0 0
    %1760 = vmatprep.subr.bf16.mxu0 0
    %1761 = vmatpush1.bf16.xpose.msra.mxu0 0
    %1762 = vmatprep.subr.bf16.mxu0 0
    %1763 = vmatpush1.bf16.xpose.msra.mxu0 0
    %1764 = vmatprep.subr.bf16.mxu0 0
    %1765 = vmatpush1.bf16.xpose.msra.mxu0 0
    %1766 = vmatprep.subr.bf16.mxu0 0
    %1767 = vmatpush1.bf16.xpose.msra.mxu0 %v1750
    %1768 = vmatprep.subr.bf16.mxu0 0
    %1769 = vmatpush2.bf16.xpose.msra.mxu0 0
    %1770 = vmatprep.subr.bf16.mxu0 0
    %1771 = vmatpush2.bf16.xpose.msra.mxu0 0
    %1772 = vmatprep.subr.bf16.mxu0 0
    %1773 = vmatpush2.bf16.xpose.msra.mxu0 0
    %1774 = vmatprep.subr.bf16.mxu0 0
    %1775 = vmatpush2.bf16.xpose.msra.mxu0 0
    %1776 = vmatprep.subr.bf16.mxu0 0
    %1777 = vmatpush2.bf16.xpose.msra.mxu0 0
    %1778 = vmatprep.subr.bf16.mxu0 0
    %1779 = vmatpush2.bf16.xpose.msra.mxu0 0
    %1780 = vmatprep.subr.bf16.mxu0 0
    %1781 = vmatpush2.bf16.xpose.msra.mxu0 0
    %1782 = vmatprep.subr.bf16.mxu0 0
    %1783 = vmatpush2.bf16.xpose.msra.mxu0 0
    %1784 = vmatprep.mubr.bf16.mxu0 0
    %1785 = vmatmul.mubr.bf16.gmra.mxu0 %v1747
    %v1786 = vpop.f32.mrf.mxu0
    %v1787 = vadd.f32 0.0, %v1786
    %v1788 = vpop.f32.mrf.mxu0
    %v1789 = vpop.f32.mrf.mxu0
    %v1790 = vadd.f32 0.0, %v1789
    %v1791 = vpop.f32.mrf.mxu0
    %1792 = vdwg.mxu0
    %v1793 = vsel %vm485, %v1740, -inf
    %1794 = vmax.xlane.f32.xlu0 %v1793
    %v1795 = vpop.xlane.xlu0 %1794
    %v1796 = vsel %vm485, %v1743, -inf
    %1797 = vmax.xlane.f32.xlu0 %v1796
    %v1798 = vpop.xlane.xlu0 %1797
    %v1799 = vsel %vm485, %v1787, -inf
    %1800 = vmax.xlane.f32.xlu0 %v1799
    %v1801 = vpop.xlane.xlu0 %1800
    %v1802 = vsel %vm485, %v1790, -inf
    %1803 = vmax.xlane.f32.xlu0 %v1802
    %v1804 = vpop.xlane.xlu0 %1803
    %v1805 = vsub.f32 %v1740, %v1795
    %v1806 = vsub.f32 %v1743, %v1798
    %v1807 = vsub.f32 %v1787, %v1801
    %v1808 = vsub.f32 %v1790, %v1804
    %v1809 = vmul.f32 %v1805, 1.442695
    %v1810 = vpow.pop %v1809
    %v1811 = vmul.f32 %v1806, 1.442695
    %v1812 = vpow.pop %v1811
    %v1813 = vmul.f32 %v1807, 1.442695
    %v1814 = vpow.pop %v1813
    %v1815 = vmul.f32 %v1808, 1.442695
    %v1816 = vpow.pop %v1815
    %v1817 = vsel %vm485, %v1810, 0.0
    %1818 = vadd.xlane.f32.xlu0 %v1817
    %v1819 = vpop.xlane.xlu0 %1818
    %v1820 = vsel %vm485, %v1812, 0.0
    %1821 = vadd.xlane.f32.xlu0 %v1820
    %v1822 = vpop.xlane.xlu0 %1821
    %v1823 = vsel %vm485, %v1814, 0.0
    %1824 = vadd.xlane.f32.xlu0 %v1823
    %v1825 = vpop.xlane.xlu0 %1824
    %v1826 = vsel %vm485, %v1816, 0.0
    %1827 = vadd.xlane.f32.xlu0 %v1826
    %v1828 = vpop.xlane.xlu0 %1827
    %v1829 = vrcp.pop %v1819
    %v1830 = vrcp.pop %v1822
    %v1831 = vrcp.pop %v1825
    %v1832 = vrcp.pop %v1828
    %v1833 = vmul.f32 %v1810, %v1829
    %v1834 = vmul.f32 %v1812, %v1830
    %v1835 = vmul.f32 %v1814, %v1831
    %v1836 = vmul.f32 %v1816, %v1832
    %v1837 = vpack.c.bf16 %v1834, %v1833
    %v1838 = vpack.c.bf16 %v1836, %v1835
    %v1840 = vsel %vm485, %v1837, 0
    %1842 = vmatprep.subr.bf16.mxu0 0
    %1843 = vmatpush1.bf16.msra.mxu0 0
    %1844 = vmatprep.subr.bf16.mxu0 0
    %1845 = vmatpush1.bf16.msra.mxu0 0
    %1846 = vmatprep.subr.bf16.mxu0 0
    %1847 = vmatpush1.bf16.msra.mxu0 0
    %1848 = vmatprep.subr.bf16.mxu0 0
    %1849 = vmatpush1.bf16.msra.mxu0 0
    %1850 = vmatprep.subr.bf16.mxu0 0
    %1851 = vmatpush1.bf16.msra.mxu0 0
    %1852 = vmatprep.subr.bf16.mxu0 0
    %1853 = vmatpush1.bf16.msra.mxu0 0
    %1854 = vmatprep.subr.bf16.mxu0 0
    %1855 = vmatpush1.bf16.msra.mxu0 0
    %1856 = vmatprep.subr.bf16.mxu0 0
    %1857 = vmatpush1.bf16.msra.mxu0 %v1697
    %1858 = vmatprep.subr.bf16.mxu0 0
    %1859 = vmatpush2.bf16.msra.mxu0 0
    %1860 = vmatprep.subr.bf16.mxu0 0
    %1861 = vmatpush2.bf16.msra.mxu0 0
    %1862 = vmatprep.subr.bf16.mxu0 0
    %1863 = vmatpush2.bf16.msra.mxu0 0
    %1864 = vmatprep.subr.bf16.mxu0 0
    %1865 = vmatpush2.bf16.msra.mxu0 0
    %1866 = vmatprep.subr.bf16.mxu0 0
    %1867 = vmatpush2.bf16.msra.mxu0 0
    %1868 = vmatprep.subr.bf16.mxu0 0
    %1869 = vmatpush2.bf16.msra.mxu0 0
    %1870 = vmatprep.subr.bf16.mxu0 0
    %1871 = vmatpush2.bf16.msra.mxu0 0
    %1872 = vmatprep.subr.bf16.mxu0 0
    %1873 = vmatpush2.bf16.msra.mxu0 0
    %1874 = vmatprep.mubr.bf16.mxu0 0
    %1875 = vmatmul.mubr.bf16.gmra.mxu0 %v1840
    %v1876 = vpop.f32.mrf.mxu0
    %v1877 = vadd.f32 0.0, %v1876
    %v1878 = vpop.f32.mrf.mxu0
    %v1879 = vpop.f32.mrf.mxu0
    %v1880 = vadd.f32 0.0, %v1879
    %v1881 = vpop.f32.mrf.mxu0
    %1882 = vdwg.mxu0
    %v1884 = vsel %vm485, %v1838, 0
    %1886 = vmatprep.subr.bf16.mxu0 0
    %1887 = vmatpush1.bf16.msra.mxu0 0
    %1888 = vmatprep.subr.bf16.mxu0 0
    %1889 = vmatpush1.bf16.msra.mxu0 0
    %1890 = vmatprep.subr.bf16.mxu0 0
    %1891 = vmatpush1.bf16.msra.mxu0 0
    %1892 = vmatprep.subr.bf16.mxu0 0
    %1893 = vmatpush1.bf16.msra.mxu0 0
    %1894 = vmatprep.subr.bf16.mxu0 0
    %1895 = vmatpush1.bf16.msra.mxu0 0
    %1896 = vmatprep.subr.bf16.mxu0 0
    %1897 = vmatpush1.bf16.msra.mxu0 0
    %1898 = vmatprep.subr.bf16.mxu0 0
    %1899 = vmatpush1.bf16.msra.mxu0 0
    %1900 = vmatprep.subr.bf16.mxu0 0
    %1901 = vmatpush1.bf16.msra.mxu0 %v1698
    %1902 = vmatprep.subr.bf16.mxu0 0
    %1903 = vmatpush2.bf16.msra.mxu0 0
    %1904 = vmatprep.subr.bf16.mxu0 0
    %1905 = vmatpush2.bf16.msra.mxu0 0
    %1906 = vmatprep.subr.bf16.mxu0 0
    %1907 = vmatpush2.bf16.msra.mxu0 0
    %1908 = vmatprep.subr.bf16.mxu0 0
    %1909 = vmatpush2.bf16.msra.mxu0 0
    %1910 = vmatprep.subr.bf16.mxu0 0
    %1911 = vmatpush2.bf16.msra.mxu0 0
    %1912 = vmatprep.subr.bf16.mxu0 0
    %1913 = vmatpush2.bf16.msra.mxu0 0
    %1914 = vmatprep.subr.bf16.mxu0 0
    %1915 = vmatpush2.bf16.msra.mxu0 0
    %1916 = vmatprep.subr.bf16.mxu0 0
    %1917 = vmatpush2.bf16.msra.mxu0 0
    %1918 = vmatprep.mubr.bf16.mxu0 0
    %1919 = vmatmul.mubr.bf16.gmra.mxu0 %v1884
    %v1920 = vpop.f32.mrf.mxu0
    %v1921 = vadd.f32 0.0, %v1920
    %v1922 = vpop.f32.mrf.mxu0
    %v1923 = vpop.f32.mrf.mxu0
    %v1924 = vadd.f32 0.0, %v1923
    %v1925 = vpop.f32.mrf.mxu0
    %1926 = vdwg.mxu0
    %v1927 = vpack.c.bf16 %v1880, %v1877
    %v1928 = vpack.c.bf16 %v1924, %v1921
    %s1929 = scalar_lea.vmem %s4, 32
    %v1930 = vld [vmem:[%s1929] sm:$0xf]
    %v1931 = vld [vmem:[%s1929 + $0x4] sm:$0xf]
    %v1932 = vld [vmem:[%s1929 + $0x8] sm:$0xf]
    %v1933 = vld [vmem:[%s1929 + $0xc] sm:$0xf]
    %v1938 = vunpack.c.l.b16 %v1930
    %v1939 = vunpack.c.l.b16 %v1931
    %v1940 = vunpack.c.l.b16 %v1932
    %v1941 = vunpack.c.l.b16 %v1933
    %v1942 = vpack.c.b16 %v1939, %v1938
    %v1943 = vpack.c.b16 %v1941, %v1940
    %v1947 = vsel %vm390, %v1927, 0
    %v1950 = vsel %vm390, %v1928, 0
    %1952 = vmatprep.subr.bf16.mxu0 0
    %1953 = vmatpush1.bf16.msra.mxu0 0
    %1954 = vmatprep.subr.bf16.mxu0 0
    %1955 = vmatpush1.bf16.msra.mxu0 0
    %1956 = vmatprep.subr.bf16.mxu0 0
    %1957 = vmatpush1.bf16.msra.mxu0 0
    %1958 = vmatprep.subr.bf16.mxu0 0
    %1959 = vmatpush1.bf16.msra.mxu0 0
    %1960 = vmatprep.subr.bf16.mxu0 0
    %1961 = vmatpush1.bf16.msra.mxu0 0
    %1962 = vmatprep.subr.bf16.mxu0 0
    %1963 = vmatpush1.bf16.msra.mxu0 0
    %1964 = vmatprep.subr.bf16.mxu0 0
    %1965 = vmatpush1.bf16.msra.mxu0 %v1943
    %1966 = vmatprep.subr.bf16.mxu0 0
    %1967 = vmatpush1.bf16.msra.mxu0 %v1942
    %1968 = vmatprep.subr.bf16.mxu0 0
    %1969 = vmatpush2.bf16.msra.mxu0 0
    %1970 = vmatprep.subr.bf16.mxu0 0
    %1971 = vmatpush2.bf16.msra.mxu0 0
    %1972 = vmatprep.subr.bf16.mxu0 0
    %1973 = vmatpush2.bf16.msra.mxu0 0
    %1974 = vmatprep.subr.bf16.mxu0 0
    %1975 = vmatpush2.bf16.msra.mxu0 0
    %1976 = vmatprep.subr.bf16.mxu0 0
    %1977 = vmatpush2.bf16.msra.mxu0 0
    %1978 = vmatprep.subr.bf16.mxu0 0
    %1979 = vmatpush2.bf16.msra.mxu0 0
    %1980 = vmatprep.subr.bf16.mxu0 0
    %1981 = vmatpush2.bf16.msra.mxu0 0
    %1982 = vmatprep.subr.bf16.mxu0 0
    %1983 = vmatpush2.bf16.msra.mxu0 0
    %1984 = vmatprep.mubr.bf16.mxu0 0
    %1985 = vmatmul.mubr.bf16.gmra.mxu0 %v1947
    %v1986 = vpop.f32.mrf.mxu0
    %v1987 = vadd.f32 0.0, %v1986
    %v1988 = vpop.f32.mrf.mxu0
    %v1989 = vpop.f32.mrf.mxu0
    %v1990 = vadd.f32 0.0, %v1989
    %v1991 = vpop.f32.mrf.mxu0
    %1992 = vmatprep.mubr.bf16.mxu0 0
    %1993 = vmatmul.mubr.bf16.gmra.mxu0 %v1950
    %v1994 = vpop.f32.mrf.mxu0
    %v1995 = vadd.f32 0.0, %v1994
    %v1996 = vpop.f32.mrf.mxu0
    %v1997 = vpop.f32.mrf.mxu0
    %v1998 = vadd.f32 0.0, %v1997
    %v1999 = vpop.f32.mrf.mxu0
    %2000 = vdwg.mxu0
    %v2001 = vadd.f32 %v1333, %v1987
    %v2002 = vadd.f32 %v1336, %v1990
    %v2003 = vadd.f32 %v1341, %v1995
    %v2004 = vadd.f32 %v1344, %v1998
    %s2005 = scalar_lea.vmem %s1, 192
    %v2006 = vld [vmem:[%s2005] sm:$0xf]
    %v2007 = vld [vmem:[%s2005 + $0x4] sm:$0xf]
    %v2008 = vld [vmem:[%s2005 + $0x8] sm:$0xf]
    %v2009 = vld [vmem:[%s2005 + $0xc] sm:$0xf]
    %v2010 = vld [vmem:[%s2005 + $0x10] sm:$0xf]
    %v2011 = vld [vmem:[%s2005 + $0x14] sm:$0xf]
    %v2012 = vld [vmem:[%s2005 + $0x18] sm:$0xf]
    %v2013 = vld [vmem:[%s2005 + $0x1c] sm:$0xf]
    %v2014 = vld [vmem:[%s2005 + $0x20] sm:$0xf]
    %v2015 = vld [vmem:[%s2005 + $0x24] sm:$0xf]
    %v2016 = vld [vmem:[%s2005 + $0x28] sm:$0xf]
    %v2017 = vld [vmem:[%s2005 + $0x2c] sm:$0xf]
    %v2018 = vld [vmem:[%s2005 + $0x30] sm:$0xf]
    %v2019 = vld [vmem:[%s2005 + $0x34] sm:$0xf]
    %v2020 = vld [vmem:[%s2005 + $0x38] sm:$0xf]
    %v2021 = vld [vmem:[%s2005 + $0x3c] sm:$0xf]
    %v2038 = vunpack.c.l.b16 %v2006
    %v2039 = vunpack.c.l.b16 %v2007
    %v2040 = vunpack.c.l.b16 %v2008
    %v2041 = vunpack.c.l.b16 %v2009
    %v2042 = vunpack.c.l.b16 %v2010
    %v2043 = vunpack.c.l.b16 %v2011
    %v2044 = vunpack.c.l.b16 %v2012
    %v2045 = vunpack.c.l.b16 %v2013
    %v2046 = vunpack.c.l.b16 %v2014
    %v2047 = vunpack.c.l.b16 %v2015
    %v2048 = vunpack.c.l.b16 %v2016
    %v2049 = vunpack.c.l.b16 %v2017
    %v2050 = vunpack.c.l.b16 %v2018
    %v2051 = vunpack.c.l.b16 %v2019
    %v2052 = vunpack.c.l.b16 %v2020
    %v2053 = vunpack.c.l.b16 %v2021
    %v2054 = vpack.c.b16 %v2039, %v2038
    %v2055 = vpack.c.b16 %v2041, %v2040
    %v2056 = vpack.c.b16 %v2043, %v2042
    %v2057 = vpack.c.b16 %v2045, %v2044
    %v2058 = vpack.c.b16 %v2047, %v2046
    %v2059 = vpack.c.b16 %v2049, %v2048
    %v2060 = vpack.c.b16 %v2051, %v2050
    %v2061 = vpack.c.b16 %v2053, %v2052
    %2070 = vmatprep.subr.bf16.mxu0 0
    %2071 = vmatpush1.bf16.msra.mxu0 %v2061
    %2072 = vmatprep.subr.bf16.mxu0 0
    %2073 = vmatpush1.bf16.msra.mxu0 %v2060
    %2074 = vmatprep.subr.bf16.mxu0 0
    %2075 = vmatpush1.bf16.msra.mxu0 %v2059
    %2076 = vmatprep.subr.bf16.mxu0 0
    %2077 = vmatpush1.bf16.msra.mxu0 %v2058
    %2078 = vmatprep.subr.bf16.mxu0 0
    %2079 = vmatpush1.bf16.msra.mxu0 %v2057
    %2080 = vmatprep.subr.bf16.mxu0 0
    %2081 = vmatpush1.bf16.msra.mxu0 %v2056
    %2082 = vmatprep.subr.bf16.mxu0 0
    %2083 = vmatpush1.bf16.msra.mxu0 %v2055
    %2084 = vmatprep.subr.bf16.mxu0 0
    %2085 = vmatpush1.bf16.msra.mxu0 %v2054
    %2086 = vmatprep.subr.bf16.mxu0 0
    %2087 = vmatpush2.bf16.msra.mxu0 0
    %2088 = vmatprep.subr.bf16.mxu0 0
    %2089 = vmatpush2.bf16.msra.mxu0 0
    %2090 = vmatprep.subr.bf16.mxu0 0
    %2091 = vmatpush2.bf16.msra.mxu0 0
    %2092 = vmatprep.subr.bf16.mxu0 0
    %2093 = vmatpush2.bf16.msra.mxu0 0
    %2094 = vmatprep.subr.bf16.mxu0 0
    %2095 = vmatpush2.bf16.msra.mxu0 0
    %2096 = vmatprep.subr.bf16.mxu0 0
    %2097 = vmatpush2.bf16.msra.mxu0 0
    %2098 = vmatprep.subr.bf16.mxu0 0
    %2099 = vmatpush2.bf16.msra.mxu0 0
    %2100 = vmatprep.subr.bf16.mxu0 0
    %2101 = vmatpush2.bf16.msra.mxu0 0
    %2102 = vmatprep.mubr.bf16.mxu0 0
    %2103 = vmatmul.mubr.bf16.gmra.mxu0 %v53
    %v2104 = vpop.f32.mrf.mxu0
    %v2105 = vadd.f32 0.0, %v2104
    %v2106 = vpop.f32.mrf.mxu0
    %v2107 = vpop.f32.mrf.mxu0
    %v2108 = vadd.f32 0.0, %v2107
    %v2109 = vpop.f32.mrf.mxu0
    %2110 = vmatprep.mubr.bf16.mxu0 0
    %2111 = vmatmul.mubr.bf16.gmra.mxu0 %v54
    %v2112 = vpop.f32.mrf.mxu0
    %v2113 = vadd.f32 0.0, %v2112
    %v2114 = vpop.f32.mrf.mxu0
    %v2115 = vpop.f32.mrf.mxu0
    %v2116 = vadd.f32 0.0, %v2115
    %v2117 = vpop.f32.mrf.mxu0
    %2118 = vdwg.mxu0
    %s2119 = scalar_lea.vmem %s2, 192
    %v2120 = vld [vmem:[%s2119] sm:$0xf]
    %v2121 = vld [vmem:[%s2119 + $0x4] sm:$0xf]
    %v2122 = vld [vmem:[%s2119 + $0x8] sm:$0xf]
    %v2123 = vld [vmem:[%s2119 + $0xc] sm:$0xf]
    %v2124 = vld [vmem:[%s2119 + $0x10] sm:$0xf]
    %v2125 = vld [vmem:[%s2119 + $0x14] sm:$0xf]
    %v2126 = vld [vmem:[%s2119 + $0x18] sm:$0xf]
    %v2127 = vld [vmem:[%s2119 + $0x1c] sm:$0xf]
    %v2128 = vld [vmem:[%s2119 + $0x20] sm:$0xf]
    %v2129 = vld [vmem:[%s2119 + $0x24] sm:$0xf]
    %v2130 = vld [vmem:[%s2119 + $0x28] sm:$0xf]
    %v2131 = vld [vmem:[%s2119 + $0x2c] sm:$0xf]
    %v2132 = vld [vmem:[%s2119 + $0x30] sm:$0xf]
    %v2133 = vld [vmem:[%s2119 + $0x34] sm:$0xf]
    %v2134 = vld [vmem:[%s2119 + $0x38] sm:$0xf]
    %v2135 = vld [vmem:[%s2119 + $0x3c] sm:$0xf]
    %v2152 = vunpack.c.l.b16 %v2120
    %v2153 = vunpack.c.l.b16 %v2121
    %v2154 = vunpack.c.l.b16 %v2122
    %v2155 = vunpack.c.l.b16 %v2123
    %v2156 = vunpack.c.l.b16 %v2124
    %v2157 = vunpack.c.l.b16 %v2125
    %v2158 = vunpack.c.l.b16 %v2126
    %v2159 = vunpack.c.l.b16 %v2127
    %v2160 = vunpack.c.l.b16 %v2128
    %v2161 = vunpack.c.l.b16 %v2129
    %v2162 = vunpack.c.l.b16 %v2130
    %v2163 = vunpack.c.l.b16 %v2131
    %v2164 = vunpack.c.l.b16 %v2132
    %v2165 = vunpack.c.l.b16 %v2133
    %v2166 = vunpack.c.l.b16 %v2134
    %v2167 = vunpack.c.l.b16 %v2135
    %v2168 = vpack.c.b16 %v2153, %v2152
    %v2169 = vpack.c.b16 %v2155, %v2154
    %v2170 = vpack.c.b16 %v2157, %v2156
    %v2171 = vpack.c.b16 %v2159, %v2158
    %v2172 = vpack.c.b16 %v2161, %v2160
    %v2173 = vpack.c.b16 %v2163, %v2162
    %v2174 = vpack.c.b16 %v2165, %v2164
    %v2175 = vpack.c.b16 %v2167, %v2166
    %2184 = vmatprep.subr.bf16.mxu0 0
    %2185 = vmatpush1.bf16.msra.mxu0 %v2175
    %2186 = vmatprep.subr.bf16.mxu0 0
    %2187 = vmatpush1.bf16.msra.mxu0 %v2174
    %2188 = vmatprep.subr.bf16.mxu0 0
    %2189 = vmatpush1.bf16.msra.mxu0 %v2173
    %2190 = vmatprep.subr.bf16.mxu0 0
    %2191 = vmatpush1.bf16.msra.mxu0 %v2172
    %2192 = vmatprep.subr.bf16.mxu0 0
    %2193 = vmatpush1.bf16.msra.mxu0 %v2171
    %2194 = vmatprep.subr.bf16.mxu0 0
    %2195 = vmatpush1.bf16.msra.mxu0 %v2170
    %2196 = vmatprep.subr.bf16.mxu0 0
    %2197 = vmatpush1.bf16.msra.mxu0 %v2169
    %2198 = vmatprep.subr.bf16.mxu0 0
    %2199 = vmatpush1.bf16.msra.mxu0 %v2168
    %2200 = vmatprep.subr.bf16.mxu0 0
    %2201 = vmatpush2.bf16.msra.mxu0 0
    %2202 = vmatprep.subr.bf16.mxu0 0
    %2203 = vmatpush2.bf16.msra.mxu0 0
    %2204 = vmatprep.subr.bf16.mxu0 0
    %2205 = vmatpush2.bf16.msra.mxu0 0
    %2206 = vmatprep.subr.bf16.mxu0 0
    %2207 = vmatpush2.bf16.msra.mxu0 0
    %2208 = vmatprep.subr.bf16.mxu0 0
    %2209 = vmatpush2.bf16.msra.mxu0 0
    %2210 = vmatprep.subr.bf16.mxu0 0
    %2211 = vmatpush2.bf16.msra.mxu0 0
    %2212 = vmatprep.subr.bf16.mxu0 0
    %2213 = vmatpush2.bf16.msra.mxu0 0
    %2214 = vmatprep.subr.bf16.mxu0 0
    %2215 = vmatpush2.bf16.msra.mxu0 0
    %2216 = vmatprep.mubr.bf16.mxu0 0
    %2217 = vmatmul.mubr.bf16.gmra.mxu0 %v53
    %v2218 = vpop.f32.mrf.mxu0
    %v2219 = vadd.f32 0.0, %v2218
    %v2220 = vpop.f32.mrf.mxu0
    %v2221 = vpop.f32.mrf.mxu0
    %v2222 = vadd.f32 0.0, %v2221
    %v2223 = vpop.f32.mrf.mxu0
    %2224 = vmatprep.mubr.bf16.mxu0 0
    %2225 = vmatmul.mubr.bf16.gmra.mxu0 %v54
    %v2226 = vpop.f32.mrf.mxu0
    %v2227 = vadd.f32 0.0, %v2226
    %v2228 = vpop.f32.mrf.mxu0
    %v2229 = vpop.f32.mrf.mxu0
    %v2230 = vadd.f32 0.0, %v2229
    %v2231 = vpop.f32.mrf.mxu0
    %2232 = vdwg.mxu0
    %v2233 = vmul.f32 %v2219, 0.088388346
    %v2234 = vmul.f32 %v2222, 0.088388346
    %v2235 = vmul.f32 %v2227, 0.088388346
    %v2236 = vmul.f32 %v2230, 0.088388346
    %s2237 = scalar_lea.vmem %s3, 192
    %v2238 = vld [vmem:[%s2237] sm:$0xf]
    %v2239 = vld [vmem:[%s2237 + $0x4] sm:$0xf]
    %v2240 = vld [vmem:[%s2237 + $0x8] sm:$0xf]
    %v2241 = vld [vmem:[%s2237 + $0xc] sm:$0xf]
    %v2242 = vld [vmem:[%s2237 + $0x10] sm:$0xf]
    %v2243 = vld [vmem:[%s2237 + $0x14] sm:$0xf]
    %v2244 = vld [vmem:[%s2237 + $0x18] sm:$0xf]
    %v2245 = vld [vmem:[%s2237 + $0x1c] sm:$0xf]
    %v2246 = vld [vmem:[%s2237 + $0x20] sm:$0xf]
    %v2247 = vld [vmem:[%s2237 + $0x24] sm:$0xf]
    %v2248 = vld [vmem:[%s2237 + $0x28] sm:$0xf]
    %v2249 = vld [vmem:[%s2237 + $0x2c] sm:$0xf]
    %v2250 = vld [vmem:[%s2237 + $0x30] sm:$0xf]
    %v2251 = vld [vmem:[%s2237 + $0x34] sm:$0xf]
    %v2252 = vld [vmem:[%s2237 + $0x38] sm:$0xf]
    %v2253 = vld [vmem:[%s2237 + $0x3c] sm:$0xf]
    %v2270 = vunpack.c.l.b16 %v2238
    %v2271 = vunpack.c.l.b16 %v2239
    %v2272 = vunpack.c.l.b16 %v2240
    %v2273 = vunpack.c.l.b16 %v2241
    %v2274 = vunpack.c.l.b16 %v2242
    %v2275 = vunpack.c.l.b16 %v2243
    %v2276 = vunpack.c.l.b16 %v2244
    %v2277 = vunpack.c.l.b16 %v2245
    %v2278 = vunpack.c.l.b16 %v2246
    %v2279 = vunpack.c.l.b16 %v2247
    %v2280 = vunpack.c.l.b16 %v2248
    %v2281 = vunpack.c.l.b16 %v2249
    %v2282 = vunpack.c.l.b16 %v2250
    %v2283 = vunpack.c.l.b16 %v2251
    %v2284 = vunpack.c.l.b16 %v2252
    %v2285 = vunpack.c.l.b16 %v2253
    %v2286 = vpack.c.b16 %v2271, %v2270
    %v2287 = vpack.c.b16 %v2273, %v2272
    %v2288 = vpack.c.b16 %v2275, %v2274
    %v2289 = vpack.c.b16 %v2277, %v2276
    %v2290 = vpack.c.b16 %v2279, %v2278
    %v2291 = vpack.c.b16 %v2281, %v2280
    %v2292 = vpack.c.b16 %v2283, %v2282
    %v2293 = vpack.c.b16 %v2285, %v2284
    %2302 = vmatprep.subr.bf16.mxu0 0
    %2303 = vmatpush1.bf16.msra.mxu0 %v2293
    %2304 = vmatprep.subr.bf16.mxu0 0
    %2305 = vmatpush1.bf16.msra.mxu0 %v2292
    %2306 = vmatprep.subr.bf16.mxu0 0
    %2307 = vmatpush1.bf16.msra.mxu0 %v2291
    %2308 = vmatprep.subr.bf16.mxu0 0
    %2309 = vmatpush1.bf16.msra.mxu0 %v2290
    %2310 = vmatprep.subr.bf16.mxu0 0
    %2311 = vmatpush1.bf16.msra.mxu0 %v2289
    %2312 = vmatprep.subr.bf16.mxu0 0
    %2313 = vmatpush1.bf16.msra.mxu0 %v2288
    %2314 = vmatprep.subr.bf16.mxu0 0
    %2315 = vmatpush1.bf16.msra.mxu0 %v2287
    %2316 = vmatprep.subr.bf16.mxu0 0
    %2317 = vmatpush1.bf16.msra.mxu0 %v2286
    %2318 = vmatprep.subr.bf16.mxu0 0
    %2319 = vmatpush2.bf16.msra.mxu0 0
    %2320 = vmatprep.subr.bf16.mxu0 0
    %2321 = vmatpush2.bf16.msra.mxu0 0
    %2322 = vmatprep.subr.bf16.mxu0 0
    %2323 = vmatpush2.bf16.msra.mxu0 0
    %2324 = vmatprep.subr.bf16.mxu0 0
    %2325 = vmatpush2.bf16.msra.mxu0 0
    %2326 = vmatprep.subr.bf16.mxu0 0
    %2327 = vmatpush2.bf16.msra.mxu0 0
    %2328 = vmatprep.subr.bf16.mxu0 0
    %2329 = vmatpush2.bf16.msra.mxu0 0
    %2330 = vmatprep.subr.bf16.mxu0 0
    %2331 = vmatpush2.bf16.msra.mxu0 0
    %2332 = vmatprep.subr.bf16.mxu0 0
    %2333 = vmatpush2.bf16.msra.mxu0 0
    %2334 = vmatprep.mubr.bf16.mxu0 0
    %2335 = vmatmul.mubr.bf16.gmra.mxu0 %v53
    %v2336 = vpop.f32.mrf.mxu0
    %v2337 = vadd.f32 0.0, %v2336
    %v2338 = vpop.f32.mrf.mxu0
    %v2339 = vpop.f32.mrf.mxu0
    %v2340 = vadd.f32 0.0, %v2339
    %v2341 = vpop.f32.mrf.mxu0
    %2342 = vmatprep.mubr.bf16.mxu0 0
    %2343 = vmatmul.mubr.bf16.gmra.mxu0 %v54
    %v2344 = vpop.f32.mrf.mxu0
    %v2345 = vadd.f32 0.0, %v2344
    %v2346 = vpop.f32.mrf.mxu0
    %v2347 = vpop.f32.mrf.mxu0
    %v2348 = vadd.f32 0.0, %v2347
    %v2349 = vpop.f32.mrf.mxu0
    %2350 = vdwg.mxu0
    %v2351 = vpack.c.bf16 %v2108, %v2105
    %v2352 = vpack.c.bf16 %v2116, %v2113
    %v2353 = vpack.c.bf16 %v2234, %v2233
    %v2354 = vpack.c.bf16 %v2236, %v2235
    %v2355 = vpack.c.bf16 %v2340, %v2337
    %v2356 = vpack.c.bf16 %v2348, %v2345
    %v2358 = vsel %vm390, %v2353, 0
    %v2361 = vsel %vm390, %v2351, 0
    %2363 = vmatprep.subr.bf16.mxu0 0
    %2364 = vmatpush1.bf16.xpose.msra.mxu0 0
    %2365 = vmatprep.subr.bf16.mxu0 0
    %2366 = vmatpush1.bf16.xpose.msra.mxu0 0
    %2367 = vmatprep.subr.bf16.mxu0 0
    %2368 = vmatpush1.bf16.xpose.msra.mxu0 0
    %2369 = vmatprep.subr.bf16.mxu0 0
    %2370 = vmatpush1.bf16.xpose.msra.mxu0 0
    %2371 = vmatprep.subr.bf16.mxu0 0
    %2372 = vmatpush1.bf16.xpose.msra.mxu0 0
    %2373 = vmatprep.subr.bf16.mxu0 0
    %2374 = vmatpush1.bf16.xpose.msra.mxu0 0
    %2375 = vmatprep.subr.bf16.mxu0 0
    %2376 = vmatpush1.bf16.xpose.msra.mxu0 0
    %2377 = vmatprep.subr.bf16.mxu0 0
    %2378 = vmatpush1.bf16.xpose.msra.mxu0 %v2361
    %2379 = vmatprep.subr.bf16.mxu0 0
    %2380 = vmatpush2.bf16.xpose.msra.mxu0 0
    %2381 = vmatprep.subr.bf16.mxu0 0
    %2382 = vmatpush2.bf16.xpose.msra.mxu0 0
    %2383 = vmatprep.subr.bf16.mxu0 0
    %2384 = vmatpush2.bf16.xpose.msra.mxu0 0
    %2385 = vmatprep.subr.bf16.mxu0 0
    %2386 = vmatpush2.bf16.xpose.msra.mxu0 0
    %2387 = vmatprep.subr.bf16.mxu0 0
    %2388 = vmatpush2.bf16.xpose.msra.mxu0 0
    %2389 = vmatprep.subr.bf16.mxu0 0
    %2390 = vmatpush2.bf16.xpose.msra.mxu0 0
    %2391 = vmatprep.subr.bf16.mxu0 0
    %2392 = vmatpush2.bf16.xpose.msra.mxu0 0
    %2393 = vmatprep.subr.bf16.mxu0 0
    %2394 = vmatpush2.bf16.xpose.msra.mxu0 0
    %2395 = vmatprep.mubr.bf16.mxu0 0
    %2396 = vmatmul.mubr.bf16.gmra.mxu0 %v2358
    %v2397 = vpop.f32.mrf.mxu0
    %v2398 = vadd.f32 0.0, %v2397
    %v2399 = vpop.f32.mrf.mxu0
    %v2400 = vpop.f32.mrf.mxu0
    %v2401 = vadd.f32 0.0, %v2400
    %v2402 = vpop.f32.mrf.mxu0
    %2403 = vdwg.mxu0
    %v2405 = vsel %vm390, %v2354, 0
    %v2408 = vsel %vm390, %v2352, 0
    %2410 = vmatprep.subr.bf16.mxu0 0
    %2411 = vmatpush1.bf16.xpose.msra.mxu0 0
    %2412 = vmatprep.subr.bf16.mxu0 0
    %2413 = vmatpush1.bf16.xpose.msra.mxu0 0
    %2414 = vmatprep.subr.bf16.mxu0 0
    %2415 = vmatpush1.bf16.xpose.msra.mxu0 0
    %2416 = vmatprep.subr.bf16.mxu0 0
    %2417 = vmatpush1.bf16.xpose.msra.mxu0 0
    %2418 = vmatprep.subr.bf16.mxu0 0
    %2419 = vmatpush1.bf16.xpose.msra.mxu0 0
    %2420 = vmatprep.subr.bf16.mxu0 0
    %2421 = vmatpush1.bf16.xpose.msra.mxu0 0
    %2422 = vmatprep.subr.bf16.mxu0 0
    %2423 = vmatpush1.bf16.xpose.msra.mxu0 0
    %2424 = vmatprep.subr.bf16.mxu0 0
    %2425 = vmatpush1.bf16.xpose.msra.mxu0 %v2408
    %2426 = vmatprep.subr.bf16.mxu0 0
    %2427 = vmatpush2.bf16.xpose.msra.mxu0 0
    %2428 = vmatprep.subr.bf16.mxu0 0
    %2429 = vmatpush2.bf16.xpose.msra.mxu0 0
    %2430 = vmatprep.subr.bf16.mxu0 0
    %2431 = vmatpush2.bf16.xpose.msra.mxu0 0
    %2432 = vmatprep.subr.bf16.mxu0 0
    %2433 = vmatpush2.bf16.xpose.msra.mxu0 0
    %2434 = vmatprep.subr.bf16.mxu0 0
    %2435 = vmatpush2.bf16.xpose.msra.mxu0 0
    %2436 = vmatprep.subr.bf16.mxu0 0
    %2437 = vmatpush2.bf16.xpose.msra.mxu0 0
    %2438 = vmatprep.subr.bf16.mxu0 0
    %2439 = vmatpush2.bf16.xpose.msra.mxu0 0
    %2440 = vmatprep.subr.bf16.mxu0 0
    %2441 = vmatpush2.bf16.xpose.msra.mxu0 0
    %2442 = vmatprep.mubr.bf16.mxu0 0
    %2443 = vmatmul.mubr.bf16.gmra.mxu0 %v2405
    %v2444 = vpop.f32.mrf.mxu0
    %v2445 = vadd.f32 0.0, %v2444
    %v2446 = vpop.f32.mrf.mxu0
    %v2447 = vpop.f32.mrf.mxu0
    %v2448 = vadd.f32 0.0, %v2447
    %v2449 = vpop.f32.mrf.mxu0
    %2450 = vdwg.mxu0
    %v2451 = vsel %vm485, %v2398, -inf
    %2452 = vmax.xlane.f32.xlu0 %v2451
    %v2453 = vpop.xlane.xlu0 %2452
    %v2454 = vsel %vm485, %v2401, -inf
    %2455 = vmax.xlane.f32.xlu0 %v2454
    %v2456 = vpop.xlane.xlu0 %2455
    %v2457 = vsel %vm485, %v2445, -inf
    %2458 = vmax.xlane.f32.xlu0 %v2457
    %v2459 = vpop.xlane.xlu0 %2458
    %v2460 = vsel %vm485, %v2448, -inf
    %2461 = vmax.xlane.f32.xlu0 %v2460
    %v2462 = vpop.xlane.xlu0 %2461
    %v2463 = vsub.f32 %v2398, %v2453
    %v2464 = vsub.f32 %v2401, %v2456
    %v2465 = vsub.f32 %v2445, %v2459
    %v2466 = vsub.f32 %v2448, %v2462
    %v2467 = vmul.f32 %v2463, 1.442695
    %v2468 = vpow.pop %v2467
    %v2469 = vmul.f32 %v2464, 1.442695
    %v2470 = vpow.pop %v2469
    %v2471 = vmul.f32 %v2465, 1.442695
    %v2472 = vpow.pop %v2471
    %v2473 = vmul.f32 %v2466, 1.442695
    %v2474 = vpow.pop %v2473
    %v2475 = vsel %vm485, %v2468, 0.0
    %2476 = vadd.xlane.f32.xlu0 %v2475
    %v2477 = vpop.xlane.xlu0 %2476
    %v2478 = vsel %vm485, %v2470, 0.0
    %2479 = vadd.xlane.f32.xlu0 %v2478
    %v2480 = vpop.xlane.xlu0 %2479
    %v2481 = vsel %vm485, %v2472, 0.0
    %2482 = vadd.xlane.f32.xlu0 %v2481
    %v2483 = vpop.xlane.xlu0 %2482
    %v2484 = vsel %vm485, %v2474, 0.0
    %2485 = vadd.xlane.f32.xlu0 %v2484
    %v2486 = vpop.xlane.xlu0 %2485
    %v2487 = vrcp.pop %v2477
    %v2488 = vrcp.pop %v2480
    %v2489 = vrcp.pop %v2483
    %v2490 = vrcp.pop %v2486
    %v2491 = vmul.f32 %v2468, %v2487
    %v2492 = vmul.f32 %v2470, %v2488
    %v2493 = vmul.f32 %v2472, %v2489
    %v2494 = vmul.f32 %v2474, %v2490
    %v2495 = vpack.c.bf16 %v2492, %v2491
    %v2496 = vpack.c.bf16 %v2494, %v2493
    %v2498 = vsel %vm485, %v2495, 0
    %2500 = vmatprep.subr.bf16.mxu0 0
    %2501 = vmatpush1.bf16.msra.mxu0 0
    %2502 = vmatprep.subr.bf16.mxu0 0
    %2503 = vmatpush1.bf16.msra.mxu0 0
    %2504 = vmatprep.subr.bf16.mxu0 0
    %2505 = vmatpush1.bf16.msra.mxu0 0
    %2506 = vmatprep.subr.bf16.mxu0 0
    %2507 = vmatpush1.bf16.msra.mxu0 0
    %2508 = vmatprep.subr.bf16.mxu0 0
    %2509 = vmatpush1.bf16.msra.mxu0 0
    %2510 = vmatprep.subr.bf16.mxu0 0
    %2511 = vmatpush1.bf16.msra.mxu0 0
    %2512 = vmatprep.subr.bf16.mxu0 0
    %2513 = vmatpush1.bf16.msra.mxu0 0
    %2514 = vmatprep.subr.bf16.mxu0 0
    %2515 = vmatpush1.bf16.msra.mxu0 %v2355
    %2516 = vmatprep.subr.bf16.mxu0 0
    %2517 = vmatpush2.bf16.msra.mxu0 0
    %2518 = vmatprep.subr.bf16.mxu0 0
    %2519 = vmatpush2.bf16.msra.mxu0 0
    %2520 = vmatprep.subr.bf16.mxu0 0
    %2521 = vmatpush2.bf16.msra.mxu0 0
    %2522 = vmatprep.subr.bf16.mxu0 0
    %2523 = vmatpush2.bf16.msra.mxu0 0
    %2524 = vmatprep.subr.bf16.mxu0 0
    %2525 = vmatpush2.bf16.msra.mxu0 0
    %2526 = vmatprep.subr.bf16.mxu0 0
    %2527 = vmatpush2.bf16.msra.mxu0 0
    %2528 = vmatprep.subr.bf16.mxu0 0
    %2529 = vmatpush2.bf16.msra.mxu0 0
    %2530 = vmatprep.subr.bf16.mxu0 0
    %2531 = vmatpush2.bf16.msra.mxu0 0
    %2532 = vmatprep.mubr.bf16.mxu0 0
    %2533 = vmatmul.mubr.bf16.gmra.mxu0 %v2498
    %v2534 = vpop.f32.mrf.mxu0
    %v2535 = vadd.f32 0.0, %v2534
    %v2536 = vpop.f32.mrf.mxu0
    %v2537 = vpop.f32.mrf.mxu0
    %v2538 = vadd.f32 0.0, %v2537
    %v2539 = vpop.f32.mrf.mxu0
    %2540 = vdwg.mxu0
    %v2542 = vsel %vm485, %v2496, 0
    %2544 = vmatprep.subr.bf16.mxu0 0
    %2545 = vmatpush1.bf16.msra.mxu0 0
    %2546 = vmatprep.subr.bf16.mxu0 0
    %2547 = vmatpush1.bf16.msra.mxu0 0
    %2548 = vmatprep.subr.bf16.mxu0 0
    %2549 = vmatpush1.bf16.msra.mxu0 0
    %2550 = vmatprep.subr.bf16.mxu0 0
    %2551 = vmatpush1.bf16.msra.mxu0 0
    %2552 = vmatprep.subr.bf16.mxu0 0
    %2553 = vmatpush1.bf16.msra.mxu0 0
    %2554 = vmatprep.subr.bf16.mxu0 0
    %2555 = vmatpush1.bf16.msra.mxu0 0
    %2556 = vmatprep.subr.bf16.mxu0 0
    %2557 = vmatpush1.bf16.msra.mxu0 0
    %2558 = vmatprep.subr.bf16.mxu0 0
    %2559 = vmatpush1.bf16.msra.mxu0 %v2356
    %2560 = vmatprep.subr.bf16.mxu0 0
    %2561 = vmatpush2.bf16.msra.mxu0 0
    %2562 = vmatprep.subr.bf16.mxu0 0
    %2563 = vmatpush2.bf16.msra.mxu0 0
    %2564 = vmatprep.subr.bf16.mxu0 0
    %2565 = vmatpush2.bf16.msra.mxu0 0
    %2566 = vmatprep.subr.bf16.mxu0 0
    %2567 = vmatpush2.bf16.msra.mxu0 0
    %2568 = vmatprep.subr.bf16.mxu0 0
    %2569 = vmatpush2.bf16.msra.mxu0 0
    %2570 = vmatprep.subr.bf16.mxu0 0
    %2571 = vmatpush2.bf16.msra.mxu0 0
    %2572 = vmatprep.subr.bf16.mxu0 0
    %2573 = vmatpush2.bf16.msra.mxu0 0
    %2574 = vmatprep.subr.bf16.mxu0 0
    %2575 = vmatpush2.bf16.msra.mxu0 0
    %2576 = vmatprep.mubr.bf16.mxu0 0
    %2577 = vmatmul.mubr.bf16.gmra.mxu0 %v2542
    %v2578 = vpop.f32.mrf.mxu0
    %v2579 = vadd.f32 0.0, %v2578
    %v2580 = vpop.f32.mrf.mxu0
    %v2581 = vpop.f32.mrf.mxu0
    %v2582 = vadd.f32 0.0, %v2581
    %v2583 = vpop.f32.mrf.mxu0
    %2584 = vdwg.mxu0
    %v2585 = vpack.c.bf16 %v2538, %v2535
    %v2586 = vpack.c.bf16 %v2582, %v2579
    %s2587 = scalar_lea.vmem %s4, 48
    %v2588 = vld [vmem:[%s2587] sm:$0xf]
    %v2589 = vld [vmem:[%s2587 + $0x4] sm:$0xf]
    %v2590 = vld [vmem:[%s2587 + $0x8] sm:$0xf]
    %v2591 = vld [vmem:[%s2587 + $0xc] sm:$0xf]
    %v2596 = vunpack.c.l.b16 %v2588
    %v2597 = vunpack.c.l.b16 %v2589
    %v2598 = vunpack.c.l.b16 %v2590
    %v2599 = vunpack.c.l.b16 %v2591
    %v2600 = vpack.c.b16 %v2597, %v2596
    %v2601 = vpack.c.b16 %v2599, %v2598
    %v2605 = vsel %vm390, %v2585, 0
    %v2608 = vsel %vm390, %v2586, 0
    %2610 = vmatprep.subr.bf16.mxu0 0
    %2611 = vmatpush1.bf16.msra.mxu0 0
    %2612 = vmatprep.subr.bf16.mxu0 0
    %2613 = vmatpush1.bf16.msra.mxu0 0
    %2614 = vmatprep.subr.bf16.mxu0 0
    %2615 = vmatpush1.bf16.msra.mxu0 0
    %2616 = vmatprep.subr.bf16.mxu0 0
    %2617 = vmatpush1.bf16.msra.mxu0 0
    %2618 = vmatprep.subr.bf16.mxu0 0
    %2619 = vmatpush1.bf16.msra.mxu0 0
    %2620 = vmatprep.subr.bf16.mxu0 0
    %2621 = vmatpush1.bf16.msra.mxu0 0
    %2622 = vmatprep.subr.bf16.mxu0 0
    %2623 = vmatpush1.bf16.msra.mxu0 %v2601
    %2624 = vmatprep.subr.bf16.mxu0 0
    %2625 = vmatpush1.bf16.msra.mxu0 %v2600
    %2626 = vmatprep.subr.bf16.mxu0 0
    %2627 = vmatpush2.bf16.msra.mxu0 0
    %2628 = vmatprep.subr.bf16.mxu0 0
    %2629 = vmatpush2.bf16.msra.mxu0 0
    %2630 = vmatprep.subr.bf16.mxu0 0
    %2631 = vmatpush2.bf16.msra.mxu0 0
    %2632 = vmatprep.subr.bf16.mxu0 0
    %2633 = vmatpush2.bf16.msra.mxu0 0
    %2634 = vmatprep.subr.bf16.mxu0 0
    %2635 = vmatpush2.bf16.msra.mxu0 0
    %2636 = vmatprep.subr.bf16.mxu0 0
    %2637 = vmatpush2.bf16.msra.mxu0 0
    %2638 = vmatprep.subr.bf16.mxu0 0
    %2639 = vmatpush2.bf16.msra.mxu0 0
    %2640 = vmatprep.subr.bf16.mxu0 0
    %2641 = vmatpush2.bf16.msra.mxu0 0
    %2642 = vmatprep.mubr.bf16.mxu0 0
    %2643 = vmatmul.mubr.bf16.gmra.mxu0 %v2605
    %v2644 = vpop.f32.mrf.mxu0
    %v2645 = vadd.f32 0.0, %v2644
    %v2646 = vpop.f32.mrf.mxu0
    %v2647 = vpop.f32.mrf.mxu0
    %v2648 = vadd.f32 0.0, %v2647
    %v2649 = vpop.f32.mrf.mxu0
    %2650 = vmatprep.mubr.bf16.mxu0 0
    %2651 = vmatmul.mubr.bf16.gmra.mxu0 %v2608
    %v2652 = vpop.f32.mrf.mxu0
    %v2653 = vadd.f32 0.0, %v2652
    %v2654 = vpop.f32.mrf.mxu0
    %v2655 = vpop.f32.mrf.mxu0
    %v2656 = vadd.f32 0.0, %v2655
    %v2657 = vpop.f32.mrf.mxu0
    %2658 = vdwg.mxu0
    %v2659 = vadd.f32 %v2001, %v2645
    %v2660 = vadd.f32 %v2002, %v2648
    %v2661 = vadd.f32 %v2003, %v2653
    %v2662 = vadd.f32 %v2004, %v2656
    %v2663 = vld [vmem:[%s5] sm:$0x1]
    %v2665 = vlaneseq
    %v2666 = vshrl.u32 %v2665, 7
    %v2667 = vsub.s32 0, %v2666
    %v2668 = vrot.slane %v2663, %v2667
    %v2670 = vadd.f32 %v2659, %v2668
    %v2671 = vadd.f32 %v2660, %v2668
    %v2672 = vadd.f32 %v2661, %v2668
    %v2673 = vadd.f32 %v2662, %v2668
    %2674 = vst [vmem:[#allocation2] sm:$0xff] %v2670
    %2675 = vst [vmem:[#allocation2 + $0x8] sm:$0xff] %v2671
    %2676 = vst [vmem:[#allocation2 + $0x10] sm:$0xff] %v2672
    %2677 = vst [vmem:[#allocation2 + $0x18] sm:$0xff] %v2673
    // Predicated region
    $region26: #{tpu_custom_call.1} parent=1 // pred_check
      _
    $region27: #{tpu_custom_call.1} parent=1 // pred_check_branch
      %2679 = sbr.rel (0) target = $region29
    $region28: #{tpu_custom_call.1} parent=1 // pred_region
      %s2681 = ssub.s32 512, 512
      %2682 = vsyncadd [#allocation3], %s2681
      %s2683 = sshll.u32 [#allocation2], 4
      %s2684 = int_to_ptr.vmem [resolvable:$true] %s2683
      %2689 = dma.vmem_to_hbm [thread:$0]  %s2684, 512, %s6, [#allocation3], 128, 128, 8
    $region29: #{tpu_custom_call.1} parent=1 // pred_fallthru
      _
    // Predicated region
    $region30: #{tpu_custom_call.1} parent=1 // pred_check
      _
    $region31: #{tpu_custom_call.1} parent=1 // pred_check_branch
      %2691 = sbr.rel (0) target = $region33
    $region32: #{tpu_custom_call.1} parent=1 // pred_region
      %2692 = dma.done [#allocation3], 512
    $region33: #{tpu_custom_call.1} parent=1 // pred_fallthru
      _
    %2693 = vsyncpa [#allocation3], 1

</llo_original>
